<compile_context>
chip_gen: v5e
topology: v5e:2x2
jax: 0.10.0
libtpu: 0.0.40
codegen_flags: <defaults>
</compile_context>

<pallas_src>
import functools

import jax
import jax.numpy as jnp
from jax.experimental import pallas as pl
from jax.experimental.pallas import tpu as pltpu


def _round_up(x, m):
    return ((x + m - 1) // m) * m


# ----------------------------------------------------------------------------
# Fused Pallas kernel: all SAGE layers + pooling + MLP head + log_softmax
# Grid = (layer, node_row_tile).  A is streamed per row tile; h / projections
# live in resident VMEM scratch.
# ----------------------------------------------------------------------------
def fused_graphsage_kernel(a_ref, x_ref, w_ref, b_ref, inv_ref, p_ref,
                           w1_ref, b1_ref, w2_ref, b2_ref, o_ref,
                           h_ref, selfp_ref, neighp_ref, *, d, tm):
    f32, bf16 = jnp.float32, jnp.bfloat16
    l = pl.program_id(0)           # layer index
    i = pl.program_id(1)           # node-row tile index
    n_layers = pl.num_programs(0)
    n_tiles = pl.num_programs(1)

    # Load the input features into the resident activation scratch once.
    @pl.when(jnp.logical_and(l == 0, i == 0))
    def _():
        h_ref[...] = x_ref[...]

    # Once per layer: fused self/neighbor projection of the FULL node set.
    # N = 2d (=256) fills the MXU; the pre-summed bias is folded into the
    # self half here so per-tile work below is a single MXU dot + VPU adds.
    @pl.when(i == 0)
    def _():
        proj = jnp.dot(h_ref[...], w_ref[0], preferred_element_type=f32)  # [NP, 2d]
        selfp_ref[...] = proj[:, :d] + b_ref[0]
        neighp_ref[...] = proj[:, d:].astype(bf16)

    # Streamed A row tile (exact 0/1 edge counts in bf16): aggregate neighbor
    # projections with f32 accumulation, then the exact f32 1/deg row scale.
    agg = jnp.dot(a_ref[...], neighp_ref[...], preferred_element_type=f32)  # [tm, d]
    row0 = pl.multiple_of(i * tm, tm)
    hn = selfp_ref[pl.ds(row0, tm), :] + agg * inv_ref[...]
    # NOTE: padded node rows become relu(bias) != 0 after layer 1, but the
    # padded *columns* of A and of the pool matrix are zero, so padded rows can
    # never leak into real outputs.
    h_ref[pl.ds(row0, tm), :] = jnp.maximum(hn, 0.0).astype(bf16)

    # Epilogue on the very last grid step: global mean pool -> lin1 -> relu ->
    # (dropout = identity in eval) -> lin2 -> log_softmax.
    @pl.when(jnp.logical_and(l == n_layers - 1, i == n_tiles - 1))
    def _():
        pooled = jnp.dot(p_ref[...], h_ref[...], preferred_element_type=f32)  # [GP, d]
        hid = jnp.maximum(
            jnp.dot(pooled.astype(bf16), w1_ref[...], preferred_element_type=f32)
            + b1_ref[...], 0.0)
        logits = (jnp.dot(hid.astype(bf16), w2_ref[...], preferred_element_type=f32)
                  + b2_ref[...])            # padded class cols carry -1e9 via b2
        m = jnp.max(logits, axis=-1, keepdims=True)
        z = logits - m
        lse = jnp.log(jnp.sum(jnp.exp(z), axis=-1, keepdims=True))
        o_ref[...] = (z - lse).astype(o_ref.dtype)


# ----------------------------------------------------------------------------
# Wrapper-side helpers
# ----------------------------------------------------------------------------
def build_norm_adjacency(edge_index, num_nodes):
    # Reference-only: A[dst, src] = count, row-normalized (scatter-mean).
    src, dst = edge_index[0], edge_index[1]
    a = jnp.zeros((num_nodes, num_nodes), jnp.float32).at[dst, src].add(1.0)
    deg = jnp.sum(a, axis=1, keepdims=True)
    return jnp.where(deg > 0, a / jnp.maximum(deg, 1.0), 0.0)


def build_pool_matrix(batch, num_graphs, num_nodes):
    # P[g, n] = 1/|graph g| if batch[n] == g  (global_mean_pool)
    onehot = (batch[None, :] == jnp.arange(num_graphs)[:, None]).astype(jnp.float32)
    counts = jnp.sum(onehot, axis=1, keepdims=True)
    return onehot / jnp.maximum(counts, 1.0)


def _pick_vmem_limit(required_bytes):
    # Generation-aware scoped VMEM: ~3/4 of physical if queryable, else a cap
    # that is safe on every generation (v7x has only 64 MiB physical).
    cap = 56 << 20
    try:
        cap = int(pltpu.get_tpu_info().vmem_capacity_bytes) * 3 // 4
    except Exception:
        pass
    want = int(required_bytes) * 3 // 2 + (8 << 20)
    return int(min(max(want, 32 << 20), cap))


# ----------------------------------------------------------------------------
# Wrapper: pad to lane-dense shapes, stack weights, single pipelined pallas_call
# ----------------------------------------------------------------------------
def graphsage_2_forward(params, x, edge_index, batch, num_graphs):
    n, f = x.shape
    hdim = params["lin1"][0].shape[0]
    ncls = params["lin2"][0].shape[1]
    layer_params = [params["conv1"]] + list(params["convs"])
    num_layers = len(layer_params)

    d = _round_up(max(f, hdim), 128)       # lane-dense feature/hidden width
    npad = _round_up(n, 256)               # 256-aligned MXU K dim (v6e/v7x)
    gpad = _round_up(num_graphs, 8)        # sublane-aligned graph count
    cpad = _round_up(ncls, 128)            # lane-dense class dim
    tm = 512 if npad % 512 == 0 else 256   # streamed A row-tile height

    f32, bf16 = jnp.float32, jnp.bfloat16

    # Adjacency as exact 0/1 (count) values in bf16; 1/deg applied in f32
    # inside the kernel (exact mean aggregation).
    src, dst = edge_index[0], edge_index[1]
    a_cnt = jnp.zeros((npad, npad), f32).at[dst, src].add(1.0)
    deg = jnp.sum(a_cnt, axis=1, keepdims=True)
    inv_deg = jnp.where(deg > 0, 1.0 / jnp.maximum(deg, 1.0), 0.0)   # [NP, 1] f32
    a_pad = a_cnt.astype(bf16)

    x_pad = jnp.zeros((npad, d), f32).at[:n, :f].set(x).astype(bf16)

    pool = build_pool_matrix(batch, num_graphs, n)
    pool_pad = jnp.zeros((gpad, npad), f32).at[:num_graphs, :n].set(pool).astype(bf16)

    # Fused per-layer weights [W_self | W_neigh] (side by side, N = 2d) with a
    # pre-summed bias (b_self + b_neigh).
    w_stack = jnp.zeros((num_layers, d, 2 * d), f32)
    b_stack = jnp.zeros((num_layers, 1, d), f32)
    for l, (ws, bs, wn, bn) in enumerate(layer_params):
        fin, fout = ws.shape
        w_stack = w_stack.at[l, :fin, :fout].set(ws)
        w_stack = w_stack.at[l, :fin, d:d + fout].set(wn)
        b_stack = b_stack.at[l, 0, :fout].set((bs + bn)[0])
    w_stack = w_stack.astype(bf16)

    w1, b1 = params["lin1"]
    w2, b2 = params["lin2"]
    w1_pad = jnp.zeros((d, d), f32).at[:hdim, :hdim].set(w1).astype(bf16)
    b1_pad = jnp.zeros((1, d), f32).at[:, :hdim].set(b1)
    w2_pad = jnp.zeros((d, cpad), f32).at[:hdim, :ncls].set(w2).astype(bf16)
    # Padded class columns masked here (logit = 0 + (-1e9)); keeps the kernel
    # epilogue free of iota/select.
    b2_pad = jnp.full((1, cpad), -1e9, f32).at[:, :ncls].set(b2)

    inputs = (a_pad, x_pad, w_stack, b_stack, inv_deg, pool_pad,
              w1_pad, b1_pad, w2_pad, b2_pad)

    grid = (num_layers, npad // tm)

    in_specs = [
        pl.BlockSpec((tm, npad), lambda l, i: (i, 0)),         # A row tile (streamed)
        pl.BlockSpec((npad, d), lambda l, i: (0, 0)),          # x (resident)
        pl.BlockSpec((1, d, 2 * d), lambda l, i: (l, 0, 0)),   # layer weights
        pl.BlockSpec((1, 1, d), lambda l, i: (l, 0, 0)),       # layer bias
        pl.BlockSpec((tm, 1), lambda l, i: (i, 0)),            # 1/deg row tile
        pl.BlockSpec((gpad, npad), lambda l, i: (0, 0)),       # pool (resident)
        pl.BlockSpec((d, d), lambda l, i: (0, 0)),             # lin1 W
        pl.BlockSpec((1, d), lambda l, i: (0, 0)),             # lin1 b
        pl.BlockSpec((d, cpad), lambda l, i: (0, 0)),          # lin2 W
        pl.BlockSpec((1, cpad), lambda l, i: (0, 0)),          # lin2 b (-1e9 pad)
    ]
    out_specs = pl.BlockSpec((gpad, cpad), lambda l, i: (0, 0))
    scratch_shapes = [
        pltpu.VMEM((npad, d), bf16),   # resident activations h
        pltpu.VMEM((npad, d), f32),    # self projection (+bias)
        pltpu.VMEM((npad, d), bf16),   # neighbor projection (bf16 MXU operand)
    ]

    # VMEM budget: double-buffered A tile + (conservatively 2x) resident
    # operands + persistent scratch.
    resident = (npad * d * 2 + gpad * npad * 2 + d * 2 * d * 2 + d * d * 2
                + d * cpad * 2 + gpad * cpad * 4 + tm * 4 + d * 8 + cpad * 4)
    required = 2 * tm * npad * 2 + 2 * resident + npad * d * (2 + 4 + 2)
    vmem_limit = _pick_vmem_limit(required)

    flops = int(2 * num_layers * (npad * d * 2 * d + npad * npad * d)
                + 2 * (gpad * npad * d + gpad * d * d + gpad * d * cpad))
    bytes_accessed = int(num_layers * npad * npad * 2      # A streamed per layer
                         + npad * d * 2 + gpad * npad * 2 + npad * 4
                         + num_layers * (2 * d * d * 2 + d * 4)
                         + d * d * 2 + d * cpad * 2 + gpad * cpad * 4)

    kernel = functools.partial(fused_graphsage_kernel, d=d, tm=tm)
    out = pl.pallas_call(
        kernel,
        out_shape=jax.ShapeDtypeStruct((gpad, cpad), jnp.float32),
        grid_spec=pltpu.PrefetchScalarGridSpec(
            num_scalar_prefetch=0,
            grid=grid,
            in_specs=in_specs,
            out_specs=out_specs,
            scratch_shapes=scratch_shapes),
        compiler_params=pltpu.CompilerParams(
            dimension_semantics=("arbitrary", "arbitrary"),
            vmem_limit_bytes=vmem_limit),
        cost_estimate=pl.CostEstimate(flops=flops,
                                      transcendentals=int(gpad * cpad + gpad),
                                      bytes_accessed=bytes_accessed),
    )(*inputs)
    return out[:num_graphs, :ncls]


# ----------------------------------------------------------------------------
# Pure-JAX reference (f32) for correctness checking
# ----------------------------------------------------------------------------
def reference_forward(params, x, edge_index, batch, num_graphs):
    n = x.shape[0]
    a = build_norm_adjacency(edge_index, n)
    pool = build_pool_matrix(batch, num_graphs, n)
    h = x
    for (ws, bs, wn, bn) in [params["conv1"]] + list(params["convs"]):
        agg = a @ h
        h = jax.nn.relu(h @ ws + bs + agg @ wn + bn)
    pooled = pool @ h
    hid = jax.nn.relu(pooled @ params["lin1"][0] + params["lin1"][1])
    logits = hid @ params["lin2"][0] + params["lin2"][1]
    return jax.nn.log_softmax(logits, axis=-1)


# ----------------------------------------------------------------------------
# Parameter init (weights stored as [F_in, F_out], i.e. transpose of nn.Linear)
# ----------------------------------------------------------------------------
def init_params(key, num_features, hidden, num_classes, num_layers):
    def linear(k, fin, fout, scale=0.1):
        kw, kb = jax.random.split(k)
        w = (scale * jax.random.normal(kw, (fin, fout))).astype(jnp.float32)
        b = (scale * jax.random.normal(kb, (1, fout))).astype(jnp.float32)
        return w, b

    keys = jax.random.split(key, 2 * num_layers + 2)
    params = {}
    ws, bs = linear(keys[0], num_features, hidden)
    wn, bn = linear(keys[1], num_features, hidden)
    params["conv1"] = (ws, bs, wn, bn)
    convs = []
    for i in range(num_layers - 1):
        ws, bs = linear(keys[2 + 2 * i], hidden, hidden)
        wn, bn = linear(keys[3 + 2 * i], hidden, hidden)
        convs.append((ws, bs, wn, bn))
    params["convs"] = convs
    params["lin1"] = linear(keys[-2], hidden, hidden)
    params["lin2"] = linear(keys[-1], hidden, num_classes)
    return params


if __name__ == "__main__":
    key = jax.random.PRNGKey(0)
    k_x, k_e, k_p = jax.random.split(key, 3)

    # dataset-like small shapes
    num_nodes = 16
    num_features = 8
    hidden = 32
    num_classes = 4
    num_layers = 2
    num_edges = 48
    num_graphs = 2

    x = jax.random.normal(k_x, (num_nodes, num_features), jnp.float32)
    edge_index = jax.random.randint(k_e, (2, num_edges), 0, num_nodes, jnp.int32)
    batch = jnp.concatenate([
        jnp.zeros((num_nodes // 2,), jnp.int32),
        jnp.ones((num_nodes - num_nodes // 2,), jnp.int32),
    ])

    params = init_params(k_p, num_features, hidden, num_classes, num_layers)

    fwd = jax.jit(functools.partial(graphsage_2_forward, num_graphs=num_graphs))
    out = jax.block_until_ready(fwd(params, x, edge_index, batch))

    assert out.shape == (num_graphs, num_classes)
    # log_softmax rows must exponentiate-sum to ~1
    assert jnp.allclose(jnp.sum(jnp.exp(out), axis=-1), 1.0, atol=1e-4)

    # compare against the pure-JAX f32 reference (loose tol: bf16 MXU operands)
    ref = reference_forward(params, x, edge_index, batch, num_graphs)
    assert jnp.allclose(out, ref, atol=5e-2, rtol=5e-2)

    print("KERNEL_OK")
</pallas_src>

<mosaic_0001>
module attributes {stable_mosaic.version = 11 : i64} {
  func.func @fused_graphsage_kernel(%arg0: i32, %arg1: i32, %arg2: memref<256x256xbf16, #tpu.memory_space<vmem>>, %arg3: memref<256x128xbf16, #tpu.memory_space<vmem>>, %arg4: memref<1x128x256xbf16, #tpu.memory_space<vmem>>, %arg5: memref<1x1x128xf32, #tpu.memory_space<vmem>>, %arg6: memref<256x1xf32, #tpu.memory_space<vmem>>, %arg7: memref<8x256xbf16, #tpu.memory_space<vmem>>, %arg8: memref<128x128xbf16, #tpu.memory_space<vmem>>, %arg9: memref<1x128xf32, #tpu.memory_space<vmem>>, %arg10: memref<128x128xbf16, #tpu.memory_space<vmem>>, %arg11: memref<1x128xf32, #tpu.memory_space<vmem>>, %arg12: memref<8x128xf32, #tpu.memory_space<vmem>>, %arg13: memref<256x128xbf16, #tpu.memory_space<vmem>>, %arg14: memref<256x128xf32, #tpu.memory_space<vmem>>, %arg15: memref<256x128xbf16, #tpu.memory_space<vmem>>) attributes {dimension_semantics = [#tpu.dimension_semantics<arbitrary>, #tpu.dimension_semantics<arbitrary>], iteration_bounds = array<i64: 2, 1>, scalar_prefetch = 0 : i64, scratch_operands = 3 : i64, tpu.core_type = #tpu.core_type<tc>, window_params = [{transform_indices = @transform_0, window_bounds = array<i64: 256, 256>}, {pipeline_mode = #tpu.pipeline_mode<synchronous>, transform_indices = @transform_1, window_bounds = array<i64: 256, 128>}, {transform_indices = @transform_2, window_bounds = array<i64: 1, 128, 256>}, {transform_indices = @transform_3, window_bounds = array<i64: 1, 1, 128>}, {transform_indices = @transform_4, window_bounds = array<i64: 256, 1>}, {pipeline_mode = #tpu.pipeline_mode<synchronous>, transform_indices = @transform_5, window_bounds = array<i64: 8, 256>}, {pipeline_mode = #tpu.pipeline_mode<synchronous>, transform_indices = @transform_6, window_bounds = array<i64: 128, 128>}, {pipeline_mode = #tpu.pipeline_mode<synchronous>, transform_indices = @transform_7, window_bounds = array<i64: 1, 128>}, {pipeline_mode = #tpu.pipeline_mode<synchronous>, transform_indices = @transform_8, window_bounds = array<i64: 128, 128>}, {pipeline_mode = #tpu.pipeline_mode<synchronous>, transform_indices = @transform_9, window_bounds = array<i64: 1, 128>}, {pipeline_mode = #tpu.pipeline_mode<synchronous>, transform_indices = @transform_10, window_bounds = array<i64: 8, 128>}]} {
    %c0_i32 = arith.constant 0 : i32
    %0 = arith.cmpi eq, %arg0, %c0_i32 : i32
    %c0_i32_0 = arith.constant 0 : i32
    %1 = arith.cmpi eq, %arg1, %c0_i32_0 : i32
    %2 = arith.andi %0, %1 : i1
    %3 = arith.extui %2 : i1 to i32
    %c0_i32_1 = arith.constant 0 : i32
    %4 = arith.cmpi ne, %3, %c0_i32_1 : i32
    scf.if %4 {
      %c0_14 = arith.constant 0 : index
      %c0_15 = arith.constant 0 : index
      %29 = vector.load %arg3[%c0_14, %c0_15] : memref<256x128xbf16, #tpu.memory_space<vmem>>, vector<256x128xbf16>
      %c0_16 = arith.constant 0 : index
      %c0_17 = arith.constant 0 : index
      %30 = vector.load %arg13[%c0_16, %c0_17] : memref<256x128xbf16, #tpu.memory_space<vmem>>, vector<256x128xbf16>
      tpu.vector_store %arg13[%c0_16, %c0_17], %29 {strides = array<i32>} : memref<256x128xbf16, #tpu.memory_space<vmem>>, vector<256x128xbf16>,
    } else {
    }
    %c0_i32_2 = arith.constant 0 : i32
    %5 = arith.cmpi eq, %arg1, %c0_i32_2 : i32
    %6 = arith.extui %5 : i1 to i32
    %c0_i32_3 = arith.constant 0 : i32
    %7 = arith.cmpi ne, %6, %c0_i32_3 : i32
    scf.if %7 {
      %c0_14 = arith.constant 0 : index
      %c0_15 = arith.constant 0 : index
      %29 = vector.load %arg13[%c0_14, %c0_15] : memref<256x128xbf16, #tpu.memory_space<vmem>>, vector<256x128xbf16>
      %c0_16 = arith.constant 0 : index
      %c0_17 = arith.constant 0 : index
      %c0_18 = arith.constant 0 : index
      %30 = vector.load %arg4[%c0_16, %c0_17, %c0_18] : memref<1x128x256xbf16, #tpu.memory_space<vmem>>, vector<1x128x256xbf16>
      %31 = vector.shape_cast %30 : vector<1x128x256xbf16> to vector<128x256xbf16>
      %cst_19 = arith.constant dense<0.000000e+00> : vector<256x256xf32>
      %32 = tpu.matmul %29, %31, %cst_19 {dimension_numbers = #tpu.dot_dimension_numbers<[1], [0], [0], [1], [0, 0, 1, 1], [], []>} : vector<256x128xbf16>, vector<128x256xbf16>, vector<256x256xf32> -> vector<256x256xf32>
      %33 = vector.extract_strided_slice %32 {offsets = [0, 0], sizes = [256, 128], strides = [1, 1]} : vector<256x256xf32> to vector<256x128xf32>
      %c0_20 = arith.constant 0 : index
      %c0_21 = arith.constant 0 : index
      %c0_22 = arith.constant 0 : index
      %34 = vector.load %arg5[%c0_20, %c0_21, %c0_22] : memref<1x1x128xf32, #tpu.memory_space<vmem>>, vector<1x1x128xf32>
      %35 = vector.shape_cast %34 : vector<1x1x128xf32> to vector<1x128xf32>
      %36 = vector.broadcast %35 : vector<1x128xf32> to vector<256x128xf32>
      %37 = arith.addf %33, %36 : vector<256x128xf32>
      %c0_23 = arith.constant 0 : index
      %c0_24 = arith.constant 0 : index
      %38 = vector.load %arg14[%c0_23, %c0_24] : memref<256x128xf32, #tpu.memory_space<vmem>>, vector<256x128xf32>
      tpu.vector_store %arg14[%c0_23, %c0_24], %37 {strides = array<i32>} : memref<256x128xf32, #tpu.memory_space<vmem>>, vector<256x128xf32>,
      %39 = vector.extract_strided_slice %32 {offsets = [0, 128], sizes = [256, 128], strides = [1, 1]} : vector<256x256xf32> to vector<256x128xf32>
      %40 = arith.truncf %39 : vector<256x128xf32> to vector<256x128xbf16>
      %c0_25 = arith.constant 0 : index
      %c0_26 = arith.constant 0 : index
      %41 = vector.load %arg15[%c0_25, %c0_26] : memref<256x128xbf16, #tpu.memory_space<vmem>>, vector<256x128xbf16>
      tpu.vector_store %arg15[%c0_25, %c0_26], %40 {strides = array<i32>} : memref<256x128xbf16, #tpu.memory_space<vmem>>, vector<256x128xbf16>,
    } else {
    }
    %c0 = arith.constant 0 : index
    %c0_4 = arith.constant 0 : index
    %8 = vector.load %arg2[%c0, %c0_4] : memref<256x256xbf16, #tpu.memory_space<vmem>>, vector<256x256xbf16>
    %c0_5 = arith.constant 0 : index
    %c0_6 = arith.constant 0 : index
    %9 = vector.load %arg15[%c0_5, %c0_6] : memref<256x128xbf16, #tpu.memory_space<vmem>>, vector<256x128xbf16>
    %cst = arith.constant dense<0.000000e+00> : vector<256x128xf32>
    %10 = tpu.matmul %8, %9, %cst {dimension_numbers = #tpu.dot_dimension_numbers<[1], [0], [0], [1], [0, 0, 1, 1], [], []>} : vector<256x256xbf16>, vector<256x128xbf16>, vector<256x128xf32> -> vector<256x128xf32>
    %c256_i32 = arith.constant 256 : i32
    %11 = arith.muli %arg1, %c256_i32 : i32
    %12 = tpu.assume_multiple %11, 256 : i32
    %13 = arith.index_cast %12 : i32 to index
    %c0_7 = arith.constant 0 : index
    %14 = vector.load %arg14[%13, %c0_7] : memref<256x128xf32, #tpu.memory_space<vmem>>, vector<256x128xf32>
    %c0_8 = arith.constant 0 : index
    %c0_9 = arith.constant 0 : index
    %15 = vector.load %arg6[%c0_8, %c0_9] : memref<256x1xf32, #tpu.memory_space<vmem>>, vector<256x1xf32>
    %16 = vector.broadcast %15 : vector<256x1xf32> to vector<256x128xf32>
    %17 = arith.mulf %10, %16 : vector<256x128xf32>
    %18 = arith.addf %14, %17 : vector<256x128xf32>
    %cst_10 = arith.constant 0.000000e+00 : f32
    %19 = vector.broadcast %cst_10 : f32 to vector<256x128xf32>
    %20 = arith.maximumf %18, %19 : vector<256x128xf32>
    %21 = arith.truncf %20 : vector<256x128xf32> to vector<256x128xbf16>
    %22 = arith.index_cast %12 : i32 to index
    %c0_11 = arith.constant 0 : index
    %23 = vector.load %arg13[%22, %c0_11] : memref<256x128xbf16, #tpu.memory_space<vmem>>, vector<256x128xbf16>
    tpu.vector_store %arg13[%22, %c0_11], %21 {strides = array<i32>} : memref<256x128xbf16, #tpu.memory_space<vmem>>, vector<256x128xbf16>,
    %c1_i32 = arith.constant 1 : i32
    %24 = arith.cmpi eq, %arg0, %c1_i32 : i32
    %c0_i32_12 = arith.constant 0 : i32
    %25 = arith.cmpi eq, %arg1, %c0_i32_12 : i32
    %26 = arith.andi %24, %25 : i1
    %27 = arith.extui %26 : i1 to i32
    %c0_i32_13 = arith.constant 0 : i32
    %28 = arith.cmpi ne, %27, %c0_i32_13 : i32
    scf.if %28 {
      %c0_14 = arith.constant 0 : index
      %c0_15 = arith.constant 0 : index
      %29 = vector.load %arg7[%c0_14, %c0_15] : memref<8x256xbf16, #tpu.memory_space<vmem>>, vector<8x256xbf16>
      %c0_16 = arith.constant 0 : index
      %c0_17 = arith.constant 0 : index
      %30 = vector.load %arg13[%c0_16, %c0_17] : memref<256x128xbf16, #tpu.memory_space<vmem>>, vector<256x128xbf16>
      %cst_18 = arith.constant dense<0.000000e+00> : vector<8x128xf32>
      %31 = tpu.matmul %29, %30, %cst_18 {dimension_numbers = #tpu.dot_dimension_numbers<[1], [0], [0], [1], [0, 0, 1, 1], [], []>} : vector<8x256xbf16>, vector<256x128xbf16>, vector<8x128xf32> -> vector<8x128xf32>
      %32 = arith.truncf %31 : vector<8x128xf32> to vector<8x128xbf16>
      %c0_19 = arith.constant 0 : index
      %c0_20 = arith.constant 0 : index
      %33 = vector.load %arg8[%c0_19, %c0_20] : memref<128x128xbf16, #tpu.memory_space<vmem>>, vector<128x128xbf16>
      %cst_21 = arith.constant dense<0.000000e+00> : vector<8x128xf32>
      %34 = tpu.matmul %32, %33, %cst_21 {dimension_numbers = #tpu.dot_dimension_numbers<[1], [0], [0], [1], [0, 0, 1, 1], [], []>} : vector<8x128xbf16>, vector<128x128xbf16>, vector<8x128xf32> -> vector<8x128xf32>
      %c0_22 = arith.constant 0 : index
      %c0_23 = arith.constant 0 : index
      %35 = vector.load %arg9[%c0_22, %c0_23] : memref<1x128xf32, #tpu.memory_space<vmem>>, vector<1x128xf32>
      %36 = vector.broadcast %35 : vector<1x128xf32> to vector<8x128xf32>
      %37 = arith.addf %34, %36 : vector<8x128xf32>
      %cst_24 = arith.constant 0.000000e+00 : f32
      %38 = vector.broadcast %cst_24 : f32 to vector<8x128xf32>
      %39 = arith.maximumf %37, %38 : vector<8x128xf32>
      %40 = arith.truncf %39 : vector<8x128xf32> to vector<8x128xbf16>
      %c0_25 = arith.constant 0 : index
      %c0_26 = arith.constant 0 : index
      %41 = vector.load %arg10[%c0_25, %c0_26] : memref<128x128xbf16, #tpu.memory_space<vmem>>, vector<128x128xbf16>
      %cst_27 = arith.constant dense<0.000000e+00> : vector<8x128xf32>
      %42 = tpu.matmul %40, %41, %cst_27 {dimension_numbers = #tpu.dot_dimension_numbers<[1], [0], [0], [1], [0, 0, 1, 1], [], []>} : vector<8x128xbf16>, vector<128x128xbf16>, vector<8x128xf32> -> vector<8x128xf32>
      %c0_28 = arith.constant 0 : index
      %c0_29 = arith.constant 0 : index
      %43 = vector.load %arg11[%c0_28, %c0_29] : memref<1x128xf32, #tpu.memory_space<vmem>>, vector<1x128xf32>
      %44 = vector.broadcast %43 : vector<1x128xf32> to vector<8x128xf32>
      %45 = arith.addf %42, %44 : vector<8x128xf32>
      %cst_30 = arith.constant dense<0xFF800000> : vector<8xf32>
      %46 = vector.multi_reduction <maximumf>, %45, %cst_30 [1] : vector<8x128xf32> to vector<8xf32>
      %47 = vector.shape_cast %46 : vector<8xf32> to vector<8x1xf32>
      %48 = vector.broadcast %47 : vector<8x1xf32> to vector<8x128xf32>
      %49 = arith.subf %45, %48 : vector<8x128xf32>
      %50 = math.exp %49 : vector<8x128xf32>
      %cst_31 = arith.constant dense<0.000000e+00> : vector<8xf32>
      %51 = vector.multi_reduction <add>, %50, %cst_31 [1] : vector<8x128xf32> to vector<8xf32>
      %52 = vector.shape_cast %51 : vector<8xf32> to vector<8x1xf32>
      %53 = math.log %52 : vector<8x1xf32>
      %54 = vector.broadcast %53 : vector<8x1xf32> to vector<8x128xf32>
      %55 = arith.subf %49, %54 : vector<8x128xf32>
      %c0_32 = arith.constant 0 : index
      %c0_33 = arith.constant 0 : index
      %56 = vector.load %arg12[%c0_32, %c0_33] : memref<8x128xf32, #tpu.memory_space<vmem>>, vector<8x128xf32>
      tpu.vector_store %arg12[%c0_32, %c0_33], %55 {strides = array<i32>} : memref<8x128xf32, #tpu.memory_space<vmem>>, vector<8x128xf32>,
    } else {
    }
    return
  }
  func.func @transform_0(%arg0: i32, %arg1: i32) -> (i32, i32) {
    %c0_i32 = arith.constant 0 : i32
    %c0_i32_0 = arith.constant 0 : i32
    return %arg1, %c0_i32 : i32, i32
  }
  func.func @transform_1(%arg0: i32, %arg1: i32) -> (i32, i32) {
    %c0_i32 = arith.constant 0 : i32
    %c0_i32_0 = arith.constant 0 : i32
    %c0_i32_1 = arith.constant 0 : i32
    return %c0_i32, %c0_i32_0 : i32, i32
  }
  func.func @transform_2(%arg0: i32, %arg1: i32) -> (i32, i32, i32) {
    %c0_i32 = arith.constant 0 : i32
    %c0_i32_0 = arith.constant 0 : i32
    %c0_i32_1 = arith.constant 0 : i32
    return %arg0, %c0_i32, %c0_i32_0 : i32, i32, i32
  }
  func.func @transform_3(%arg0: i32, %arg1: i32) -> (i32, i32, i32) {
    %c0_i32 = arith.constant 0 : i32
    %c0_i32_0 = arith.constant 0 : i32
    %c0_i32_1 = arith.constant 0 : i32
    return %arg0, %c0_i32, %c0_i32_0 : i32, i32, i32
  }
  func.func @transform_4(%arg0: i32, %arg1: i32) -> (i32, i32) {
    %c0_i32 = arith.constant 0 : i32
    %c0_i32_0 = arith.constant 0 : i32
    return %arg1, %c0_i32 : i32, i32
  }
  func.func @transform_5(%arg0: i32, %arg1: i32) -> (i32, i32) {
    %c0_i32 = arith.constant 0 : i32
    %c0_i32_0 = arith.constant 0 : i32
    %c0_i32_1 = arith.constant 0 : i32
    return %c0_i32, %c0_i32_0 : i32, i32
  }
  func.func @transform_6(%arg0: i32, %arg1: i32) -> (i32, i32) {
    %c0_i32 = arith.constant 0 : i32
    %c0_i32_0 = arith.constant 0 : i32
    %c0_i32_1 = arith.constant 0 : i32
    return %c0_i32, %c0_i32_0 : i32, i32
  }
  func.func @transform_7(%arg0: i32, %arg1: i32) -> (i32, i32) {
    %c0_i32 = arith.constant 0 : i32
    %c0_i32_0 = arith.constant 0 : i32
    %c0_i32_1 = arith.constant 0 : i32
    return %c0_i32, %c0_i32_0 : i32, i32
  }
  func.func @transform_8(%arg0: i32, %arg1: i32) -> (i32, i32) {
    %c0_i32 = arith.constant 0 : i32
    %c0_i32_0 = arith.constant 0 : i32
    %c0_i32_1 = arith.constant 0 : i32
    return %c0_i32, %c0_i32_0 : i32, i32
  }
  func.func @transform_9(%arg0: i32, %arg1: i32) -> (i32, i32) {
    %c0_i32 = arith.constant 0 : i32
    %c0_i32_0 = arith.constant 0 : i32
    %c0_i32_1 = arith.constant 0 : i32
    return %c0_i32, %c0_i32_0 : i32, i32
  }
  func.func @transform_10(%arg0: i32, %arg1: i32) -> (i32, i32) {
    %c0_i32 = arith.constant 0 : i32
    %c0_i32_0 = arith.constant 0 : i32
    %c0_i32_1 = arith.constant 0 : i32
    return %c0_i32, %c0_i32_0 : i32, i32
  }
}

</mosaic_0001>

<llo_original>
// kernel: graphsage_2_forward.1
$region0: #{graphsage_2_forward.1}
  #allocation0 [shape = 'u32[]', space=smem, size = 0x4, offset = 0x4, fixed_abs, tag = 'smem constant byte address 0x4 - core index']
  #allocation1 [shape = 'u32[72,128]{1,0:T(1,128)}', space=vmem, size = 0x9000, scoped, tag = 'internal scratch']
  #allocation2 [shape = 'bf16[256,128]{1,0:T(8,128)(2,1)}', space=vmem, size = 0x10000, scoped, tag = 'scratch operand']
  #allocation3 [shape = 'f32[256,128]{1,0:T(8,128)}', space=vmem, size = 0x20000, scoped, tag = 'scratch operand']
  #allocation4 [shape = 'bf16[256,128]{1,0:T(8,128)(2,1)}', space=vmem, size = 0x10000, scoped, tag = 'scratch operand']
  %s0 = inlined_call_operand.vmem [shape: bf16[256,256], index: 0, kind: input, shape index: {}]
  %s1 = inlined_call_operand.vmem [shape: bf16[256,128], index: 1, kind: input, shape index: {}]
  %s2 = inlined_call_operand.vmem [shape: bf16[2,128,256], index: 2, kind: input, shape index: {}]
  %s3 = inlined_call_operand.vmem [shape: f32[2,1,128], index: 3, kind: input, shape index: {}]
  %s4 = inlined_call_operand.vmem [shape: f32[256,1], index: 4, kind: input, shape index: {}]
  %s5 = inlined_call_operand.vmem [shape: bf16[8,256], index: 5, kind: input, shape index: {}]
  %s6 = inlined_call_operand.vmem [shape: bf16[128,128], index: 6, kind: input, shape index: {}]
  %s7 = inlined_call_operand.vmem [shape: f32[1,128], index: 7, kind: input, shape index: {}]
  %s8 = inlined_call_operand.vmem [shape: bf16[128,128], index: 8, kind: input, shape index: {}]
  %s9 = inlined_call_operand.vmem [shape: f32[1,128], index: 9, kind: input, shape index: {}]
  %s10 = inlined_call_operand.vmem [shape: f32[8,128], index: 10, kind: output, shape index: {}]
  %s11 = sld [smem:[#allocation0]]
  $region85: #{graphsage_2_forward.1} parent=0
    _
  %s13 = ssub.s32 1, %s11
  %s14 = scalar_select 0, %s13, %s11
  loop: start=0, step=1, limit=4
  $region2: #{graphsage_2_forward.1} parent=0 // loop_pre_header
    _
  $region3: #{graphsage_2_forward.1} parent=0 // loop_header
    %s16 = sphi 0, %s20
    %p17 = scmp.ge.s32.totalorder %s16, 4
    %s23 = sphi 0, %s35
    %s24 = sphi 0, %s31
    %s25 = sphi 0, %s23
    %s26 = sphi 0, %s24
    %s27 = sphi 0, %s25
    %s28 = sphi 0, %s26
    %s38 = sphi 0, %s40
    %s41 = sphi 0, %s38
    %s42 = sphi 0, %s41
    %s58 = sphi 0, %s42
    %s62 = sphi 0, %s62
    %s64 = sphi 0, %s62
    %s65 = sphi 0, %s64
    %s79 = sphi 0, %s65
    %s85 = sphi 0, %s87
    %s88 = sphi 0, %s85
    %s89 = sphi 0, %s88
    %s105 = sphi 0, %s89
    %s111 = sphi 0, %s113
    %s114 = sphi 0, %s111
    %s115 = sphi 0, %s114
    %s131 = sphi 0, %s115
    %s137 = sphi 0, %s139
    %s140 = sphi 0, %s137
    %s141 = sphi 0, %s140
    %s157 = sphi 0, %s141
    %s161 = sphi 0, %s161
    %s163 = sphi 0, %s161
    %s164 = sphi 0, %s163
    %s178 = sphi 0, %s164
    %s182 = sphi 0, %s182
    %s184 = sphi 0, %s182
    %s185 = sphi 0, %s184
    %s199 = sphi 0, %s185
    %s203 = sphi 0, %s203
    %s205 = sphi 0, %s203
    %s206 = sphi 0, %s205
    %s220 = sphi 0, %s206
    %s224 = sphi 0, %s224
    %s226 = sphi 0, %s224
    %s227 = sphi 0, %s226
    %s241 = sphi 0, %s227
    %s245 = sphi 0, %s245
    %s247 = sphi 0, %s245
    %s248 = sphi 0, %s247
    %s262 = sphi 0, %s248
    %s266 = sphi 0, %s266
    %s268 = sphi 0, %s266
    %s269 = sphi 0, %s268
    %s283 = sphi 0, %s269
  $region4: #{graphsage_2_forward.1} parent=0 // loop_header_branch
    %19 = sbr.rel (%p17) target = $region8
  $region5: #{graphsage_2_forward.1} parent=0 // loop_body
    %s21 = ssub.s32 %s16, 1
    %s22 = ssub.s32 %s16, 2
    %s29 = sadd.s32 1, %s24
    %p30 = scmp.ge.s32.totalorder %s29, 1
    %s31 = scalar_select %p30, 0, %s29
    %s32 = sadd.s32 1, %s23
    %s33 = scalar_select %p30, %s32, %s23
    %p34 = scmp.ge.s32.totalorder %s33, 2
    %s35 = scalar_select %p34, 0, %s33
    %s36 = ssub.s32 %s24, %s31
    %p37 = scmp.eq.s32.totalorder %s36, 0
    %s39 = sadd.s32 %s38, 1
    %s40 = scalar_select %p37, %s38, %s39
    %p43 = pneg %p37
    %p44 = scmp.eq.s32.totalorder %s16, 1
    %p45 = por %p43, %p44
    %p46 = scmp.ne.s32.totalorder %s38, %s41
    %p47 = scmp.eq.s32.totalorder %s16, 0
    %p48 = por %p46, %p47
    %p49 = scmp.ne.s32.totalorder %s38, %s41
    %p50 = scmp.eq.s32.totalorder %s21, 1
    %p51 = por %p49, %p50
    %p52 = scmp.ne.s32.totalorder %s41, %s42
    %p53 = scmp.eq.s32.totalorder %s21, 0
    %p54 = por %p52, %p53
    %p55 = scmp.ne.s32.totalorder %s41, %s42
    %p56 = scmp.eq.s32.totalorder %s22, 1
    %p57 = por %p55, %p56
    %p59 = scmp.ne.s32.totalorder %s42, %s58
    %p60 = scmp.eq.s32.totalorder %s22, 0
    %p61 = por %p59, %p60
    %s63 = sadd.s32 %s62, 1
    %p66 = scmp.eq.s32.totalorder %s16, 1
    %p67 = scmp.ne.s32.totalorder %s62, %s64
    %p68 = scmp.eq.s32.totalorder %s16, 0
    %p69 = por %p67, %p68
    %p70 = scmp.ne.s32.totalorder %s62, %s64
    %p71 = scmp.eq.s32.totalorder %s21, 1
    %p72 = por %p70, %p71
    %p73 = scmp.ne.s32.totalorder %s64, %s65
    %p74 = scmp.eq.s32.totalorder %s21, 0
    %p75 = por %p73, %p74
    %p76 = scmp.ne.s32.totalorder %s64, %s65
    %p77 = scmp.eq.s32.totalorder %s22, 1
    %p78 = por %p76, %p77
    %p80 = scmp.ne.s32.totalorder %s65, %s79
    %p81 = scmp.eq.s32.totalorder %s22, 0
    %p82 = por %p80, %p81
    %s83 = ssub.s32 %s23, %s35
    %p84 = scmp.eq.s32.totalorder %s83, 0
    %s86 = sadd.s32 %s85, 1
    %s87 = scalar_select %p84, %s85, %s86
    %p90 = pneg %p84
    %p91 = scmp.eq.s32.totalorder %s16, 1
    %p92 = por %p90, %p91
    %p93 = scmp.ne.s32.totalorder %s85, %s88
    %p94 = scmp.eq.s32.totalorder %s16, 0
    %p95 = por %p93, %p94
    %p96 = scmp.ne.s32.totalorder %s85, %s88
    %p97 = scmp.eq.s32.totalorder %s21, 1
    %p98 = por %p96, %p97
    %p99 = scmp.ne.s32.totalorder %s88, %s89
    %p100 = scmp.eq.s32.totalorder %s21, 0
    %p101 = por %p99, %p100
    %p102 = scmp.ne.s32.totalorder %s88, %s89
    %p103 = scmp.eq.s32.totalorder %s22, 1
    %p104 = por %p102, %p103
    %p106 = scmp.ne.s32.totalorder %s89, %s105
    %p107 = scmp.eq.s32.totalorder %s22, 0
    %p108 = por %p106, %p107
    %s109 = ssub.s32 %s23, %s35
    %p110 = scmp.eq.s32.totalorder %s109, 0
    %s112 = sadd.s32 %s111, 1
    %s113 = scalar_select %p110, %s111, %s112
    %p116 = pneg %p110
    %p117 = scmp.eq.s32.totalorder %s16, 1
    %p118 = por %p116, %p117
    %p119 = scmp.ne.s32.totalorder %s111, %s114
    %p120 = scmp.eq.s32.totalorder %s16, 0
    %p121 = por %p119, %p120
    %p122 = scmp.ne.s32.totalorder %s111, %s114
    %p123 = scmp.eq.s32.totalorder %s21, 1
    %p124 = por %p122, %p123
    %p125 = scmp.ne.s32.totalorder %s114, %s115
    %p126 = scmp.eq.s32.totalorder %s21, 0
    %p127 = por %p125, %p126
    %p128 = scmp.ne.s32.totalorder %s114, %s115
    %p129 = scmp.eq.s32.totalorder %s22, 1
    %p130 = por %p128, %p129
    %p132 = scmp.ne.s32.totalorder %s115, %s131
    %p133 = scmp.eq.s32.totalorder %s22, 0
    %p134 = por %p132, %p133
    %s135 = ssub.s32 %s24, %s31
    %p136 = scmp.eq.s32.totalorder %s135, 0
    %s138 = sadd.s32 %s137, 1
    %s139 = scalar_select %p136, %s137, %s138
    %p142 = pneg %p136
    %p143 = scmp.eq.s32.totalorder %s16, 1
    %p144 = por %p142, %p143
    %p145 = scmp.ne.s32.totalorder %s137, %s140
    %p146 = scmp.eq.s32.totalorder %s16, 0
    %p147 = por %p145, %p146
    %p148 = scmp.ne.s32.totalorder %s137, %s140
    %p149 = scmp.eq.s32.totalorder %s21, 1
    %p150 = por %p148, %p149
    %p151 = scmp.ne.s32.totalorder %s140, %s141
    %p152 = scmp.eq.s32.totalorder %s21, 0
    %p153 = por %p151, %p152
    %p154 = scmp.ne.s32.totalorder %s140, %s141
    %p155 = scmp.eq.s32.totalorder %s22, 1
    %p156 = por %p154, %p155
    %p158 = scmp.ne.s32.totalorder %s141, %s157
    %p159 = scmp.eq.s32.totalorder %s22, 0
    %p160 = por %p158, %p159
    %s162 = sadd.s32 %s161, 1
    %p165 = scmp.eq.s32.totalorder %s16, 1
    %p166 = scmp.ne.s32.totalorder %s161, %s163
    %p167 = scmp.eq.s32.totalorder %s16, 0
    %p168 = por %p166, %p167
    %p169 = scmp.ne.s32.totalorder %s161, %s163
    %p170 = scmp.eq.s32.totalorder %s21, 1
    %p171 = por %p169, %p170
    %p172 = scmp.ne.s32.totalorder %s163, %s164
    %p173 = scmp.eq.s32.totalorder %s21, 0
    %p174 = por %p172, %p173
    %p175 = scmp.ne.s32.totalorder %s163, %s164
    %p176 = scmp.eq.s32.totalorder %s22, 1
    %p177 = por %p175, %p176
    %p179 = scmp.ne.s32.totalorder %s164, %s178
    %p180 = scmp.eq.s32.totalorder %s22, 0
    %p181 = por %p179, %p180
    %s183 = sadd.s32 %s182, 1
    %p186 = scmp.eq.s32.totalorder %s16, 1
    %p187 = scmp.ne.s32.totalorder %s182, %s184
    %p188 = scmp.eq.s32.totalorder %s16, 0
    %p189 = por %p187, %p188
    %p190 = scmp.ne.s32.totalorder %s182, %s184
    %p191 = scmp.eq.s32.totalorder %s21, 1
    %p192 = por %p190, %p191
    %p193 = scmp.ne.s32.totalorder %s184, %s185
    %p194 = scmp.eq.s32.totalorder %s21, 0
    %p195 = por %p193, %p194
    %p196 = scmp.ne.s32.totalorder %s184, %s185
    %p197 = scmp.eq.s32.totalorder %s22, 1
    %p198 = por %p196, %p197
    %p200 = scmp.ne.s32.totalorder %s185, %s199
    %p201 = scmp.eq.s32.totalorder %s22, 0
    %p202 = por %p200, %p201
    %s204 = sadd.s32 %s203, 1
    %p207 = scmp.eq.s32.totalorder %s16, 1
    %p208 = scmp.ne.s32.totalorder %s203, %s205
    %p209 = scmp.eq.s32.totalorder %s16, 0
    %p210 = por %p208, %p209
    %p211 = scmp.ne.s32.totalorder %s203, %s205
    %p212 = scmp.eq.s32.totalorder %s21, 1
    %p213 = por %p211, %p212
    %p214 = scmp.ne.s32.totalorder %s205, %s206
    %p215 = scmp.eq.s32.totalorder %s21, 0
    %p216 = por %p214, %p215
    %p217 = scmp.ne.s32.totalorder %s205, %s206
    %p218 = scmp.eq.s32.totalorder %s22, 1
    %p219 = por %p217, %p218
    %p221 = scmp.ne.s32.totalorder %s206, %s220
    %p222 = scmp.eq.s32.totalorder %s22, 0
    %p223 = por %p221, %p222
    %s225 = sadd.s32 %s224, 1
    %p228 = scmp.eq.s32.totalorder %s16, 1
    %p229 = scmp.ne.s32.totalorder %s224, %s226
    %p230 = scmp.eq.s32.totalorder %s16, 0
    %p231 = por %p229, %p230
    %p232 = scmp.ne.s32.totalorder %s224, %s226
    %p233 = scmp.eq.s32.totalorder %s21, 1
    %p234 = por %p232, %p233
    %p235 = scmp.ne.s32.totalorder %s226, %s227
    %p236 = scmp.eq.s32.totalorder %s21, 0
    %p237 = por %p235, %p236
    %p238 = scmp.ne.s32.totalorder %s226, %s227
    %p239 = scmp.eq.s32.totalorder %s22, 1
    %p240 = por %p238, %p239
    %p242 = scmp.ne.s32.totalorder %s227, %s241
    %p243 = scmp.eq.s32.totalorder %s22, 0
    %p244 = por %p242, %p243
    %s246 = sadd.s32 %s245, 1
    %p249 = scmp.eq.s32.totalorder %s16, 1
    %p250 = scmp.ne.s32.totalorder %s245, %s247
    %p251 = scmp.eq.s32.totalorder %s16, 0
    %p252 = por %p250, %p251
    %p253 = scmp.ne.s32.totalorder %s245, %s247
    %p254 = scmp.eq.s32.totalorder %s21, 1
    %p255 = por %p253, %p254
    %p256 = scmp.ne.s32.totalorder %s247, %s248
    %p257 = scmp.eq.s32.totalorder %s21, 0
    %p258 = por %p256, %p257
    %p259 = scmp.ne.s32.totalorder %s247, %s248
    %p260 = scmp.eq.s32.totalorder %s22, 1
    %p261 = por %p259, %p260
    %p263 = scmp.ne.s32.totalorder %s248, %s262
    %p264 = scmp.eq.s32.totalorder %s22, 0
    %p265 = por %p263, %p264
    %s267 = sadd.s32 %s266, 1
    %p270 = scmp.eq.s32.totalorder %s16, 1
    %p271 = scmp.ne.s32.totalorder %s266, %s268
    %p272 = scmp.eq.s32.totalorder %s16, 0
    %p273 = por %p271, %p272
    %p274 = scmp.ne.s32.totalorder %s266, %s268
    %p275 = scmp.eq.s32.totalorder %s21, 1
    %p276 = por %p274, %p275
    %p277 = scmp.ne.s32.totalorder %s268, %s269
    %p278 = scmp.eq.s32.totalorder %s21, 0
    %p279 = por %p277, %p278
    %p280 = scmp.ne.s32.totalorder %s268, %s269
    %p281 = scmp.eq.s32.totalorder %s22, 1
    %p282 = por %p280, %p281
    %p284 = scmp.ne.s32.totalorder %s269, %s283
    %p285 = scmp.eq.s32.totalorder %s22, 0
    %p286 = por %p284, %p285
    %p287 = scmp.le.s32.totalorder 1, %s16
    %p288 = scmp.lt.s32.totalorder %s16, 3
    %p289 = pnand %p287, %p288
    %p290 = pneg %p289
    // Predicated region
    $region9: #{graphsage_2_forward.1} parent=5 // pred_check
      _
    $region10: #{graphsage_2_forward.1} parent=5 // pred_check_branch
      %292 = sbr.rel (%p289) target = $region12
    $region11: #{graphsage_2_forward.1} parent=5 // pred_region
      %s293 = ssub.s32 %s16, 1
      // Predicated region
      $region13: #{graphsage_2_forward.1} parent=11 // pred_check
        %p294 = pneg %p54
      $region14: #{graphsage_2_forward.1} parent=11 // pred_check_branch
        %296 = sbr.rel (%p294) target = $region16
      $region15: #{graphsage_2_forward.1} parent=11 // pred_region
        %s297 = smul.u32 32, %s26
        %p298 = scmp.lt.s32.totalorder %s297, 31
        %s299 = scalar_select %p298, %s297, 31
        %s300 = smul.addr %s299, 2
        %s301 = smul.addr %s300, 4
        %s302 = scalar_lea.vmem %s0, %s301
        %s303 = smul.u32 32, %s26
      $region16: #{graphsage_2_forward.1} parent=11 // pred_fallthru
        _
      // Predicated region
      $region17: #{graphsage_2_forward.1} parent=11 // pred_check
        %p304 = pneg %p75
      $region18: #{graphsage_2_forward.1} parent=11 // pred_check_branch
        %306 = sbr.rel (%p304) target = $region20
      $region19: #{graphsage_2_forward.1} parent=11 // pred_region
        _
      $region20: #{graphsage_2_forward.1} parent=11 // pred_fallthru
        _
      // Predicated region
      $region21: #{graphsage_2_forward.1} parent=11 // pred_check
        %p307 = pneg %p153
      $region22: #{graphsage_2_forward.1} parent=11 // pred_check_branch
        %309 = sbr.rel (%p307) target = $region24
      $region23: #{graphsage_2_forward.1} parent=11 // pred_region
        %s310 = smul.u32 32, %s26
        %p311 = scmp.lt.s32.totalorder %s310, 31
        %s312 = scalar_select %p311, %s310, 31
        %s313 = smul.addr %s312, 8
        %s314 = scalar_lea.vmem %s4, %s313
        %s315 = smul.u32 32, %s26
      $region24: #{graphsage_2_forward.1} parent=11 // pred_fallthru
        _
      // Predicated region
      $region25: #{graphsage_2_forward.1} parent=11 // pred_check
        %p316 = pneg %p174
      $region26: #{graphsage_2_forward.1} parent=11 // pred_check_branch
        %318 = sbr.rel (%p316) target = $region28
      $region27: #{graphsage_2_forward.1} parent=11 // pred_region
        _
      $region28: #{graphsage_2_forward.1} parent=11 // pred_fallthru
        _
      // Predicated region
      $region29: #{graphsage_2_forward.1} parent=11 // pred_check
        %p319 = pneg %p195
      $region30: #{graphsage_2_forward.1} parent=11 // pred_check_branch
        %321 = sbr.rel (%p319) target = $region32
      $region31: #{graphsage_2_forward.1} parent=11 // pred_region
        _
      $region32: #{graphsage_2_forward.1} parent=11 // pred_fallthru
        _
      // Predicated region
      $region33: #{graphsage_2_forward.1} parent=11 // pred_check
        %p322 = pneg %p216
      $region34: #{graphsage_2_forward.1} parent=11 // pred_check_branch
        %324 = sbr.rel (%p322) target = $region36
      $region35: #{graphsage_2_forward.1} parent=11 // pred_region
        _
      $region36: #{graphsage_2_forward.1} parent=11 // pred_fallthru
        _
      // Predicated region
      $region37: #{graphsage_2_forward.1} parent=11 // pred_check
        %p325 = pneg %p237
      $region38: #{graphsage_2_forward.1} parent=11 // pred_check_branch
        %327 = sbr.rel (%p325) target = $region40
      $region39: #{graphsage_2_forward.1} parent=11 // pred_region
        _
      $region40: #{graphsage_2_forward.1} parent=11 // pred_fallthru
        _
      // Predicated region
      $region41: #{graphsage_2_forward.1} parent=11 // pred_check
        %p328 = pneg %p258
      $region42: #{graphsage_2_forward.1} parent=11 // pred_check_branch
        %330 = sbr.rel (%p328) target = $region44
      $region43: #{graphsage_2_forward.1} parent=11 // pred_region
        _
      $region44: #{graphsage_2_forward.1} parent=11 // pred_fallthru
        _
    $region12: #{graphsage_2_forward.1} parent=5 // pred_fallthru
      _
    %p331 = scmp.lt.s32.totalorder %s16, 2
    // Predicated region
    $region45: #{graphsage_2_forward.1} parent=5 // pred_check
      %p332 = pneg %p331
    $region46: #{graphsage_2_forward.1} parent=5 // pred_check_branch
      %334 = sbr.rel (%p332) target = $region48
    $region47: #{graphsage_2_forward.1} parent=5 // pred_region
      // Predicated region
      $region49: #{graphsage_2_forward.1} parent=47 // pred_check
        %p335 = pneg %p95
      $region50: #{graphsage_2_forward.1} parent=47 // pred_check_branch
        %337 = sbr.rel (%p335) target = $region52
      $region51: #{graphsage_2_forward.1} parent=47 // pred_region
        %p338 = scmp.lt.s32.totalorder %s23, 1
        %s339 = scalar_select %p338, %s23, 1
        %s340 = smul.addr %s339, 32
        %s341 = smul.addr %s340, 4
        %s342 = scalar_lea.vmem %s2, %s341
      $region52: #{graphsage_2_forward.1} parent=47 // pred_fallthru
        _
      // Predicated region
      $region53: #{graphsage_2_forward.1} parent=47 // pred_check
        %p343 = pneg %p121
      $region54: #{graphsage_2_forward.1} parent=47 // pred_check_branch
        %345 = sbr.rel (%p343) target = $region56
      $region55: #{graphsage_2_forward.1} parent=47 // pred_region
        %p346 = scmp.lt.s32.totalorder %s23, 1
        %s347 = scalar_select %p346, %s23, 1
        %s348 = scalar_lea.vmem %s3, %s347
      $region56: #{graphsage_2_forward.1} parent=47 // pred_fallthru
        _
    $region48: #{graphsage_2_forward.1} parent=5 // pred_fallthru
      _
    %p349 = scmp.le.s32.totalorder 1, %s16
    %p350 = scmp.lt.s32.totalorder %s16, 3
    %p351 = pnand %p349, %p350
    %p352 = pneg %p351
    // Predicated region
    $region57: #{graphsage_2_forward.1} parent=5 // pred_check
      _
    $region58: #{graphsage_2_forward.1} parent=5 // pred_check_branch
      %354 = sbr.rel (%p351) target = $region60
    $region59: #{graphsage_2_forward.1} parent=5 // pred_region
      %s355 = ssub.s32 %s16, 1
      %s356 = smul.u32 32, %s26
      %p357 = scmp.lt.s32.totalorder %s356, 31
      %s358 = scalar_select %p357, %s356, 31
      %s359 = smul.addr %s358, 2
      %s360 = smul.addr %s359, 4
      %s361 = scalar_lea.vmem %s0, %s360
      %p362 = pneg %p54
      %p363 = pneg %p51
      %p364 = pneg %p75
      %p365 = pneg %p72
      %p366 = scmp.lt.s32.totalorder %s25, 1
      %s367 = scalar_select %p366, %s25, 1
      %s368 = smul.addr %s367, 32
      %s369 = smul.addr %s368, 4
      %s370 = scalar_lea.vmem %s2, %s369
      %p371 = pneg %p101
      %p372 = pneg %p98
      %p373 = scmp.lt.s32.totalorder %s25, 1
      %s374 = scalar_select %p373, %s25, 1
      %s375 = scalar_lea.vmem %s3, %s374
      %p376 = pneg %p127
      %p377 = pneg %p124
      %s378 = smul.u32 32, %s26
      %p379 = scmp.lt.s32.totalorder %s378, 31
      %s380 = scalar_select %p379, %s378, 31
      %s381 = smul.addr %s380, 8
      %s382 = scalar_lea.vmem %s4, %s381
      %p383 = pneg %p153
      %p384 = pneg %p150
      %p385 = pneg %p174
      %p386 = pneg %p171
      %p387 = pneg %p195
      %p388 = pneg %p192
      %p389 = pneg %p216
      %p390 = pneg %p213
      %p391 = pneg %p237
      %p392 = pneg %p234
      %p393 = pneg %p258
      %p394 = pneg %p255
      %p395 = pneg %p279
      %p396 = pneg %p276
      %s397 = smul.u32 32, %s26
      %p398 = scmp.lt.s32.totalorder %s397, 31
      %s399 = scalar_select %p398, %s397, 31
      %s400 = smul.addr %s399, 2
      %s401 = smul.addr %s400, 4
      %s402 = scalar_lea.vmem %s0, %s401
      %s403 = smul.u32 32, %s26
      %p404 = scmp.lt.s32.totalorder %s25, 1
      %s405 = scalar_select %p404, %s25, 1
      %s406 = smul.addr %s405, 32
      %s407 = smul.addr %s406, 4
      %s408 = scalar_lea.vmem %s2, %s407
      %p409 = scmp.lt.s32.totalorder %s25, 1
      %s410 = scalar_select %p409, %s25, 1
      %s411 = scalar_lea.vmem %s3, %s410
      %s412 = smul.u32 32, %s26
      %p413 = scmp.lt.s32.totalorder %s412, 31
      %s414 = scalar_select %p413, %s412, 31
      %s415 = smul.addr %s414, 8
      %s416 = scalar_lea.vmem %s4, %s415
      %s417 = smul.u32 32, %s26
      %p418 = scmp.eq.s32.totalorder %s25, 0
      %p419 = scmp.eq.s32.totalorder %s26, 0
      %p420 = pnand %p418, %p419
      %p421 = pneg %p420
      // Predicated region
      $region61: #{graphsage_2_forward.1} parent=59 // pred_check
        _
      $region62: #{graphsage_2_forward.1} parent=59 // pred_check_branch
        %423 = sbr.rel (%p420) target = $region64
      $region63: #{graphsage_2_forward.1} parent=59 // pred_region
        %v424 = vld [vmem:[%s1] sm:$0xf]
        %v425 = vld [vmem:[%s1 + $0x4] sm:$0xf]
        %v426 = vld [vmem:[%s1 + $0x8] sm:$0xf]
        %v427 = vld [vmem:[%s1 + $0xc] sm:$0xf]
        %v428 = vld [vmem:[%s1 + $0x10] sm:$0xf]
        %v429 = vld [vmem:[%s1 + $0x14] sm:$0xf]
        %v430 = vld [vmem:[%s1 + $0x18] sm:$0xf]
        %v431 = vld [vmem:[%s1 + $0x1c] sm:$0xf]
        %v432 = vld [vmem:[%s1 + $0x20] sm:$0xf]
        %v433 = vld [vmem:[%s1 + $0x24] sm:$0xf]
        %v434 = vld [vmem:[%s1 + $0x28] sm:$0xf]
        %v435 = vld [vmem:[%s1 + $0x2c] sm:$0xf]
        %v436 = vld [vmem:[%s1 + $0x30] sm:$0xf]
        %v437 = vld [vmem:[%s1 + $0x34] sm:$0xf]
        %v438 = vld [vmem:[%s1 + $0x38] sm:$0xf]
        %v439 = vld [vmem:[%s1 + $0x3c] sm:$0xf]
        %v440 = vld [vmem:[%s1 + $0x40] sm:$0xf]
        %v441 = vld [vmem:[%s1 + $0x44] sm:$0xf]
        %v442 = vld [vmem:[%s1 + $0x48] sm:$0xf]
        %v443 = vld [vmem:[%s1 + $0x4c] sm:$0xf]
        %v444 = vld [vmem:[%s1 + $0x50] sm:$0xf]
        %v445 = vld [vmem:[%s1 + $0x54] sm:$0xf]
        %v446 = vld [vmem:[%s1 + $0x58] sm:$0xf]
        %v447 = vld [vmem:[%s1 + $0x5c] sm:$0xf]
        %v448 = vld [vmem:[%s1 + $0x60] sm:$0xf]
        %v449 = vld [vmem:[%s1 + $0x64] sm:$0xf]
        %v450 = vld [vmem:[%s1 + $0x68] sm:$0xf]
        %v451 = vld [vmem:[%s1 + $0x6c] sm:$0xf]
        %v452 = vld [vmem:[%s1 + $0x70] sm:$0xf]
        %v453 = vld [vmem:[%s1 + $0x74] sm:$0xf]
        %v454 = vld [vmem:[%s1 + $0x78] sm:$0xf]
        %v455 = vld [vmem:[%s1 + $0x7c] sm:$0xf]
        %456 = vst [vmem:[#allocation2] sm:$0xf] %v424
        %457 = vst [vmem:[#allocation2 + $0x4] sm:$0xf] %v425
        %458 = vst [vmem:[#allocation2 + $0x8] sm:$0xf] %v426
        %459 = vst [vmem:[#allocation2 + $0xc] sm:$0xf] %v427
        %460 = vst [vmem:[#allocation2 + $0x10] sm:$0xf] %v428
        %461 = vst [vmem:[#allocation2 + $0x14] sm:$0xf] %v429
        %462 = vst [vmem:[#allocation2 + $0x18] sm:$0xf] %v430
        %463 = vst [vmem:[#allocation2 + $0x1c] sm:$0xf] %v431
        %464 = vst [vmem:[#allocation2 + $0x20] sm:$0xf] %v432
        %465 = vst [vmem:[#allocation2 + $0x24] sm:$0xf] %v433
        %466 = vst [vmem:[#allocation2 + $0x28] sm:$0xf] %v434
        %467 = vst [vmem:[#allocation2 + $0x2c] sm:$0xf] %v435
        %468 = vst [vmem:[#allocation2 + $0x30] sm:$0xf] %v436
        %469 = vst [vmem:[#allocation2 + $0x34] sm:$0xf] %v437
        %470 = vst [vmem:[#allocation2 + $0x38] sm:$0xf] %v438
        %471 = vst [vmem:[#allocation2 + $0x3c] sm:$0xf] %v439
        %472 = vst [vmem:[#allocation2 + $0x40] sm:$0xf] %v440
        %473 = vst [vmem:[#allocation2 + $0x44] sm:$0xf] %v441
        %474 = vst [vmem:[#allocation2 + $0x48] sm:$0xf] %v442
        %475 = vst [vmem:[#allocation2 + $0x4c] sm:$0xf] %v443
        %476 = vst [vmem:[#allocation2 + $0x50] sm:$0xf] %v444
        %477 = vst [vmem:[#allocation2 + $0x54] sm:$0xf] %v445
        %478 = vst [vmem:[#allocation2 + $0x58] sm:$0xf] %v446
        %479 = vst [vmem:[#allocation2 + $0x5c] sm:$0xf] %v447
        %480 = vst [vmem:[#allocation2 + $0x60] sm:$0xf] %v448
        %481 = vst [vmem:[#allocation2 + $0x64] sm:$0xf] %v449
        %482 = vst [vmem:[#allocation2 + $0x68] sm:$0xf] %v450
        %483 = vst [vmem:[#allocation2 + $0x6c] sm:$0xf] %v451
        %484 = vst [vmem:[#allocation2 + $0x70] sm:$0xf] %v452
        %485 = vst [vmem:[#allocation2 + $0x74] sm:$0xf] %v453
        %486 = vst [vmem:[#allocation2 + $0x78] sm:$0xf] %v454
        %487 = vst [vmem:[#allocation2 + $0x7c] sm:$0xf] %v455
      $region64: #{graphsage_2_forward.1} parent=59 // pred_fallthru
        _
      // Predicated region
      $region65: #{graphsage_2_forward.1} parent=59 // pred_check
        %p488 = pneg %p419
      $region66: #{graphsage_2_forward.1} parent=59 // pred_check_branch
        %490 = sbr.rel (%p488) target = $region68
      $region67: #{graphsage_2_forward.1} parent=59 // pred_region
        %v491 = vld [vmem:[#allocation2] sm:$0xf]
        %v492 = vld [vmem:[#allocation2 + $0x4] sm:$0xf]
        %v493 = vld [vmem:[#allocation2 + $0x8] sm:$0xf]
        %v494 = vld [vmem:[#allocation2 + $0xc] sm:$0xf]
        %v495 = vld [vmem:[#allocation2 + $0x10] sm:$0xf]
        %v496 = vld [vmem:[#allocation2 + $0x14] sm:$0xf]
        %v497 = vld [vmem:[#allocation2 + $0x18] sm:$0xf]
        %v498 = vld [vmem:[#allocation2 + $0x1c] sm:$0xf]
        %v499 = vld [vmem:[#allocation2 + $0x20] sm:$0xf]
        %v500 = vld [vmem:[#allocation2 + $0x24] sm:$0xf]
        %v501 = vld [vmem:[#allocation2 + $0x28] sm:$0xf]
        %v502 = vld [vmem:[#allocation2 + $0x2c] sm:$0xf]
        %v503 = vld [vmem:[#allocation2 + $0x30] sm:$0xf]
        %v504 = vld [vmem:[#allocation2 + $0x34] sm:$0xf]
        %v505 = vld [vmem:[#allocation2 + $0x38] sm:$0xf]
        %v506 = vld [vmem:[#allocation2 + $0x3c] sm:$0xf]
        %v507 = vld [vmem:[#allocation2 + $0x40] sm:$0xf]
        %v508 = vld [vmem:[#allocation2 + $0x44] sm:$0xf]
        %v509 = vld [vmem:[#allocation2 + $0x48] sm:$0xf]
        %v510 = vld [vmem:[#allocation2 + $0x4c] sm:$0xf]
        %v511 = vld [vmem:[#allocation2 + $0x50] sm:$0xf]
        %v512 = vld [vmem:[#allocation2 + $0x54] sm:$0xf]
        %v513 = vld [vmem:[#allocation2 + $0x58] sm:$0xf]
        %v514 = vld [vmem:[#allocation2 + $0x5c] sm:$0xf]
        %v515 = vld [vmem:[#allocation2 + $0x60] sm:$0xf]
        %v516 = vld [vmem:[#allocation2 + $0x64] sm:$0xf]
        %v517 = vld [vmem:[#allocation2 + $0x68] sm:$0xf]
        %v518 = vld [vmem:[#allocation2 + $0x6c] sm:$0xf]
        %v519 = vld [vmem:[#allocation2 + $0x70] sm:$0xf]
        %v520 = vld [vmem:[#allocation2 + $0x74] sm:$0xf]
        %v521 = vld [vmem:[#allocation2 + $0x78] sm:$0xf]
        %v522 = vld [vmem:[#allocation2 + $0x7c] sm:$0xf]
        %v523 = vld [vmem:[%s408] sm:$0xff]
        %v524 = vld [vmem:[%s408 + $0x8] sm:$0xff]
        %v525 = vld [vmem:[%s408 + $0x10] sm:$0xff]
        %v526 = vld [vmem:[%s408 + $0x18] sm:$0xff]
        %v527 = vld [vmem:[%s408 + $0x20] sm:$0xff]
        %v528 = vld [vmem:[%s408 + $0x28] sm:$0xff]
        %v529 = vld [vmem:[%s408 + $0x30] sm:$0xff]
        %v530 = vld [vmem:[%s408 + $0x38] sm:$0xff]
        %v531 = vld [vmem:[%s408 + $0x40] sm:$0xff]
        %v532 = vld [vmem:[%s408 + $0x48] sm:$0xff]
        %v533 = vld [vmem:[%s408 + $0x50] sm:$0xff]
        %v534 = vld [vmem:[%s408 + $0x58] sm:$0xff]
        %v535 = vld [vmem:[%s408 + $0x60] sm:$0xff]
        %v536 = vld [vmem:[%s408 + $0x68] sm:$0xff]
        %v537 = vld [vmem:[%s408 + $0x70] sm:$0xff]
        %v538 = vld [vmem:[%s408 + $0x78] sm:$0xff]
        %v571 = vunpack.c.l.b16 %v491
        %v572 = vunpack.c.l.b16 %v492
        %v573 = vunpack.c.l.b16 %v493
        %v574 = vunpack.c.l.b16 %v494
        %v575 = vunpack.c.l.b16 %v495
        %v576 = vunpack.c.l.b16 %v496
        %v577 = vunpack.c.l.b16 %v497
        %v578 = vunpack.c.l.b16 %v498
        %v579 = vunpack.c.l.b16 %v499
        %v580 = vunpack.c.l.b16 %v500
        %v581 = vunpack.c.l.b16 %v501
        %v582 = vunpack.c.l.b16 %v502
        %v583 = vunpack.c.l.b16 %v503
        %v584 = vunpack.c.l.b16 %v504
        %v585 = vunpack.c.l.b16 %v505
        %v586 = vunpack.c.l.b16 %v506
        %v587 = vunpack.c.l.b16 %v507
        %v588 = vunpack.c.l.b16 %v508
        %v589 = vunpack.c.l.b16 %v509
        %v590 = vunpack.c.l.b16 %v510
        %v591 = vunpack.c.l.b16 %v511
        %v592 = vunpack.c.l.b16 %v512
        %v593 = vunpack.c.l.b16 %v513
        %v594 = vunpack.c.l.b16 %v514
        %v595 = vunpack.c.l.b16 %v515
        %v596 = vunpack.c.l.b16 %v516
        %v597 = vunpack.c.l.b16 %v517
        %v598 = vunpack.c.l.b16 %v518
        %v599 = vunpack.c.l.b16 %v519
        %v600 = vunpack.c.l.b16 %v520
        %v601 = vunpack.c.l.b16 %v521
        %v602 = vunpack.c.l.b16 %v522
        %v603 = vpack.c.b16 %v572, %v571
        %v604 = vpack.c.b16 %v574, %v573
        %v605 = vpack.c.b16 %v576, %v575
        %v606 = vpack.c.b16 %v578, %v577
        %v607 = vpack.c.b16 %v580, %v579
        %v608 = vpack.c.b16 %v582, %v581
        %v609 = vpack.c.b16 %v584, %v583
        %v610 = vpack.c.b16 %v586, %v585
        %v611 = vpack.c.b16 %v588, %v587
        %v612 = vpack.c.b16 %v590, %v589
        %v613 = vpack.c.b16 %v592, %v591
        %v614 = vpack.c.b16 %v594, %v593
        %v615 = vpack.c.b16 %v596, %v595
        %v616 = vpack.c.b16 %v598, %v597
        %v617 = vpack.c.b16 %v600, %v599
        %v618 = vpack.c.b16 %v602, %v601
        %v651 = vunpack.c.l.b16 %v523
        %v652 = vunpack.c.h.b16 %v523
        %v653 = vunpack.c.l.b16 %v524
        %v654 = vunpack.c.h.b16 %v524
        %v655 = vunpack.c.l.b16 %v525
        %v656 = vunpack.c.h.b16 %v525
        %v657 = vunpack.c.l.b16 %v526
        %v658 = vunpack.c.h.b16 %v526
        %v659 = vunpack.c.l.b16 %v527
        %v660 = vunpack.c.h.b16 %v527
        %v661 = vunpack.c.l.b16 %v528
        %v662 = vunpack.c.h.b16 %v528
        %v663 = vunpack.c.l.b16 %v529
        %v664 = vunpack.c.h.b16 %v529
        %v665 = vunpack.c.l.b16 %v530
        %v666 = vunpack.c.h.b16 %v530
        %v667 = vunpack.c.l.b16 %v531
        %v668 = vunpack.c.h.b16 %v531
        %v669 = vunpack.c.l.b16 %v532
        %v670 = vunpack.c.h.b16 %v532
        %v671 = vunpack.c.l.b16 %v533
        %v672 = vunpack.c.h.b16 %v533
        %v673 = vunpack.c.l.b16 %v534
        %v674 = vunpack.c.h.b16 %v534
        %v675 = vunpack.c.l.b16 %v535
        %v676 = vunpack.c.h.b16 %v535
        %v677 = vunpack.c.l.b16 %v536
        %v678 = vunpack.c.h.b16 %v536
        %v679 = vunpack.c.l.b16 %v537
        %v680 = vunpack.c.h.b16 %v537
        %v681 = vunpack.c.l.b16 %v538
        %v682 = vunpack.c.h.b16 %v538
        %v683 = vpack.c.b16 %v653, %v651
        %v684 = vpack.c.b16 %v654, %v652
        %v685 = vpack.c.b16 %v657, %v655
        %v686 = vpack.c.b16 %v658, %v656
        %v687 = vpack.c.b16 %v661, %v659
        %v688 = vpack.c.b16 %v662, %v660
        %v689 = vpack.c.b16 %v665, %v663
        %v690 = vpack.c.b16 %v666, %v664
        %v691 = vpack.c.b16 %v669, %v667
        %v692 = vpack.c.b16 %v670, %v668
        %v693 = vpack.c.b16 %v673, %v671
        %v694 = vpack.c.b16 %v674, %v672
        %v695 = vpack.c.b16 %v677, %v675
        %v696 = vpack.c.b16 %v678, %v676
        %v697 = vpack.c.b16 %v681, %v679
        %v698 = vpack.c.b16 %v682, %v680
        %715 = vmatpush.bf16.msra.mxu0 %v697
        %716 = vmatpush.bf16.msra.mxu0 %v695
        %717 = vmatpush.bf16.msra.mxu0 %v693
        %718 = vmatpush.bf16.msra.mxu0 %v691
        %719 = vmatpush.bf16.msra.mxu0 %v689
        %720 = vmatpush.bf16.msra.mxu0 %v687
        %721 = vmatpush.bf16.msra.mxu0 %v685
        %722 = vmatpush.bf16.msra.mxu0 %v683
        %723 = vmatmul.bf16.gmra.mxu0 %v603
        %v724 = vpop.f32.mrf.mxu0
        %v725 = vadd.f32 0.0, %v724
        %v726 = vpop.f32.mrf.mxu0
        %v727 = vadd.f32 0.0, %v726
        %728 = vmatmul.bf16.gmra.mxu0 %v604
        %v729 = vpop.f32.mrf.mxu0
        %v730 = vadd.f32 0.0, %v729
        %v731 = vpop.f32.mrf.mxu0
        %v732 = vadd.f32 0.0, %v731
        %733 = vmatmul.bf16.gmra.mxu0 %v605
        %v734 = vpop.f32.mrf.mxu0
        %v735 = vadd.f32 0.0, %v734
        %v736 = vpop.f32.mrf.mxu0
        %v737 = vadd.f32 0.0, %v736
        %738 = vmatmul.bf16.gmra.mxu0 %v606
        %v739 = vpop.f32.mrf.mxu0
        %v740 = vadd.f32 0.0, %v739
        %v741 = vpop.f32.mrf.mxu0
        %v742 = vadd.f32 0.0, %v741
        %743 = vmatmul.bf16.gmra.mxu0 %v607
        %v744 = vpop.f32.mrf.mxu0
        %v745 = vadd.f32 0.0, %v744
        %v746 = vpop.f32.mrf.mxu0
        %v747 = vadd.f32 0.0, %v746
        %748 = vmatmul.bf16.gmra.mxu0 %v608
        %v749 = vpop.f32.mrf.mxu0
        %v750 = vadd.f32 0.0, %v749
        %v751 = vpop.f32.mrf.mxu0
        %v752 = vadd.f32 0.0, %v751
        %753 = vmatmul.bf16.gmra.mxu0 %v609
        %v754 = vpop.f32.mrf.mxu0
        %v755 = vadd.f32 0.0, %v754
        %v756 = vpop.f32.mrf.mxu0
        %v757 = vadd.f32 0.0, %v756
        %758 = vmatmul.bf16.gmra.mxu0 %v610
        %v759 = vpop.f32.mrf.mxu0
        %v760 = vadd.f32 0.0, %v759
        %v761 = vpop.f32.mrf.mxu0
        %v762 = vadd.f32 0.0, %v761
        %763 = vmatmul.bf16.gmra.mxu0 %v611
        %v764 = vpop.f32.mrf.mxu0
        %v765 = vadd.f32 0.0, %v764
        %v766 = vpop.f32.mrf.mxu0
        %v767 = vadd.f32 0.0, %v766
        %768 = vmatmul.bf16.gmra.mxu0 %v612
        %v769 = vpop.f32.mrf.mxu0
        %v770 = vadd.f32 0.0, %v769
        %v771 = vpop.f32.mrf.mxu0
        %v772 = vadd.f32 0.0, %v771
        %773 = vmatmul.bf16.gmra.mxu0 %v613
        %v774 = vpop.f32.mrf.mxu0
        %v775 = vadd.f32 0.0, %v774
        %v776 = vpop.f32.mrf.mxu0
        %v777 = vadd.f32 0.0, %v776
        %778 = vmatmul.bf16.gmra.mxu0 %v614
        %v779 = vpop.f32.mrf.mxu0
        %v780 = vadd.f32 0.0, %v779
        %v781 = vpop.f32.mrf.mxu0
        %v782 = vadd.f32 0.0, %v781
        %783 = vmatmul.bf16.gmra.mxu0 %v615
        %v784 = vpop.f32.mrf.mxu0
        %v785 = vadd.f32 0.0, %v784
        %v786 = vpop.f32.mrf.mxu0
        %v787 = vadd.f32 0.0, %v786
        %788 = vmatmul.bf16.gmra.mxu0 %v616
        %v789 = vpop.f32.mrf.mxu0
        %v790 = vadd.f32 0.0, %v789
        %v791 = vpop.f32.mrf.mxu0
        %v792 = vadd.f32 0.0, %v791
        %793 = vmatmul.bf16.gmra.mxu0 %v617
        %v794 = vpop.f32.mrf.mxu0
        %v795 = vadd.f32 0.0, %v794
        %v796 = vpop.f32.mrf.mxu0
        %v797 = vadd.f32 0.0, %v796
        %798 = vmatmul.bf16.gmra.mxu0 %v618
        %v799 = vpop.f32.mrf.mxu0
        %v800 = vadd.f32 0.0, %v799
        %v801 = vpop.f32.mrf.mxu0
        %v802 = vadd.f32 0.0, %v801
        %803 = vdwg.mxu0
        %804 = vmatpush.bf16.msra.mxu0 %v698
        %805 = vmatpush.bf16.msra.mxu0 %v696
        %806 = vmatpush.bf16.msra.mxu0 %v694
        %807 = vmatpush.bf16.msra.mxu0 %v692
        %808 = vmatpush.bf16.msra.mxu0 %v690
        %809 = vmatpush.bf16.msra.mxu0 %v688
        %810 = vmatpush.bf16.msra.mxu0 %v686
        %811 = vmatpush.bf16.msra.mxu0 %v684
        %812 = vmatmul.bf16.gmra.mxu0 %v603
        %v813 = vpop.f32.mrf.mxu0
        %v814 = vadd.f32 0.0, %v813
        %v815 = vpop.f32.mrf.mxu0
        %v816 = vadd.f32 0.0, %v815
        %817 = vmatmul.bf16.gmra.mxu0 %v604
        %v818 = vpop.f32.mrf.mxu0
        %v819 = vadd.f32 0.0, %v818
        %v820 = vpop.f32.mrf.mxu0
        %v821 = vadd.f32 0.0, %v820
        %822 = vmatmul.bf16.gmra.mxu0 %v605
        %v823 = vpop.f32.mrf.mxu0
        %v824 = vadd.f32 0.0, %v823
        %v825 = vpop.f32.mrf.mxu0
        %v826 = vadd.f32 0.0, %v825
        %827 = vmatmul.bf16.gmra.mxu0 %v606
        %v828 = vpop.f32.mrf.mxu0
        %v829 = vadd.f32 0.0, %v828
        %v830 = vpop.f32.mrf.mxu0
        %v831 = vadd.f32 0.0, %v830
        %832 = vmatmul.bf16.gmra.mxu0 %v607
        %v833 = vpop.f32.mrf.mxu0
        %v834 = vadd.f32 0.0, %v833
        %v835 = vpop.f32.mrf.mxu0
        %v836 = vadd.f32 0.0, %v835
        %837 = vmatmul.bf16.gmra.mxu0 %v608
        %v838 = vpop.f32.mrf.mxu0
        %v839 = vadd.f32 0.0, %v838
        %v840 = vpop.f32.mrf.mxu0
        %v841 = vadd.f32 0.0, %v840
        %842 = vmatmul.bf16.gmra.mxu0 %v609
        %v843 = vpop.f32.mrf.mxu0
        %v844 = vadd.f32 0.0, %v843
        %v845 = vpop.f32.mrf.mxu0
        %v846 = vadd.f32 0.0, %v845
        %847 = vmatmul.bf16.gmra.mxu0 %v610
        %v848 = vpop.f32.mrf.mxu0
        %v849 = vadd.f32 0.0, %v848
        %v850 = vpop.f32.mrf.mxu0
        %v851 = vadd.f32 0.0, %v850
        %852 = vmatmul.bf16.gmra.mxu0 %v611
        %v853 = vpop.f32.mrf.mxu0
        %v854 = vadd.f32 0.0, %v853
        %v855 = vpop.f32.mrf.mxu0
        %v856 = vadd.f32 0.0, %v855
        %857 = vmatmul.bf16.gmra.mxu0 %v612
        %v858 = vpop.f32.mrf.mxu0
        %v859 = vadd.f32 0.0, %v858
        %v860 = vpop.f32.mrf.mxu0
        %v861 = vadd.f32 0.0, %v860
        %862 = vmatmul.bf16.gmra.mxu0 %v613
        %v863 = vpop.f32.mrf.mxu0
        %v864 = vadd.f32 0.0, %v863
        %v865 = vpop.f32.mrf.mxu0
        %v866 = vadd.f32 0.0, %v865
        %867 = vmatmul.bf16.gmra.mxu0 %v614
        %v868 = vpop.f32.mrf.mxu0
        %v869 = vadd.f32 0.0, %v868
        %v870 = vpop.f32.mrf.mxu0
        %v871 = vadd.f32 0.0, %v870
        %872 = vmatmul.bf16.gmra.mxu0 %v615
        %v873 = vpop.f32.mrf.mxu0
        %v874 = vadd.f32 0.0, %v873
        %v875 = vpop.f32.mrf.mxu0
        %v876 = vadd.f32 0.0, %v875
        %877 = vmatmul.bf16.gmra.mxu0 %v616
        %v878 = vpop.f32.mrf.mxu0
        %v879 = vadd.f32 0.0, %v878
        %v880 = vpop.f32.mrf.mxu0
        %v881 = vadd.f32 0.0, %v880
        %882 = vmatmul.bf16.gmra.mxu0 %v617
        %v883 = vpop.f32.mrf.mxu0
        %v884 = vadd.f32 0.0, %v883
        %v885 = vpop.f32.mrf.mxu0
        %v886 = vadd.f32 0.0, %v885
        %887 = vmatmul.bf16.gmra.mxu0 %v618
        %v888 = vpop.f32.mrf.mxu0
        %v889 = vadd.f32 0.0, %v888
        %v890 = vpop.f32.mrf.mxu0
        %v891 = vadd.f32 0.0, %v890
        %892 = vdwg.mxu0
        %v893 = vld [vmem:[%s411] sm:$0x1]
        %v895 = vperm.slane %v893, 0
        %v897 = vadd.f32 %v725, %v895
        %v898 = vadd.f32 %v727, %v895
        %v899 = vadd.f32 %v730, %v895
        %v900 = vadd.f32 %v732, %v895
        %v901 = vadd.f32 %v735, %v895
        %v902 = vadd.f32 %v737, %v895
        %v903 = vadd.f32 %v740, %v895
        %v904 = vadd.f32 %v742, %v895
        %v905 = vadd.f32 %v745, %v895
        %v906 = vadd.f32 %v747, %v895
        %v907 = vadd.f32 %v750, %v895
        %v908 = vadd.f32 %v752, %v895
        %v909 = vadd.f32 %v755, %v895
        %v910 = vadd.f32 %v757, %v895
        %v911 = vadd.f32 %v760, %v895
        %v912 = vadd.f32 %v762, %v895
        %v913 = vadd.f32 %v765, %v895
        %v914 = vadd.f32 %v767, %v895
        %v915 = vadd.f32 %v770, %v895
        %v916 = vadd.f32 %v772, %v895
        %v917 = vadd.f32 %v775, %v895
        %v918 = vadd.f32 %v777, %v895
        %v919 = vadd.f32 %v780, %v895
        %v920 = vadd.f32 %v782, %v895
        %v921 = vadd.f32 %v785, %v895
        %v922 = vadd.f32 %v787, %v895
        %v923 = vadd.f32 %v790, %v895
        %v924 = vadd.f32 %v792, %v895
        %v925 = vadd.f32 %v795, %v895
        %v926 = vadd.f32 %v797, %v895
        %v927 = vadd.f32 %v800, %v895
        %v928 = vadd.f32 %v802, %v895
        %929 = vst [vmem:[#allocation3] sm:$0xff] %v897
        %930 = vst [vmem:[#allocation3 + $0x8] sm:$0xff] %v898
        %931 = vst [vmem:[#allocation3 + $0x10] sm:$0xff] %v899
        %932 = vst [vmem:[#allocation3 + $0x18] sm:$0xff] %v900
        %933 = vst [vmem:[#allocation3 + $0x20] sm:$0xff] %v901
        %934 = vst [vmem:[#allocation3 + $0x28] sm:$0xff] %v902
        %935 = vst [vmem:[#allocation3 + $0x30] sm:$0xff] %v903
        %936 = vst [vmem:[#allocation3 + $0x38] sm:$0xff] %v904
        %937 = vst [vmem:[#allocation3 + $0x40] sm:$0xff] %v905
        %938 = vst [vmem:[#allocation3 + $0x48] sm:$0xff] %v906
        %939 = vst [vmem:[#allocation3 + $0x50] sm:$0xff] %v907
        %940 = vst [vmem:[#allocation3 + $0x58] sm:$0xff] %v908
        %941 = vst [vmem:[#allocation3 + $0x60] sm:$0xff] %v909
        %942 = vst [vmem:[#allocation3 + $0x68] sm:$0xff] %v910
        %943 = vst [vmem:[#allocation3 + $0x70] sm:$0xff] %v911
        %944 = vst [vmem:[#allocation3 + $0x78] sm:$0xff] %v912
        %945 = vst [vmem:[#allocation3 + $0x80] sm:$0xff] %v913
        %946 = vst [vmem:[#allocation3 + $0x88] sm:$0xff] %v914
        %947 = vst [vmem:[#allocation3 + $0x90] sm:$0xff] %v915
        %948 = vst [vmem:[#allocation3 + $0x98] sm:$0xff] %v916
        %949 = vst [vmem:[#allocation3 + $0xa0] sm:$0xff] %v917
        %950 = vst [vmem:[#allocation3 + $0xa8] sm:$0xff] %v918
        %951 = vst [vmem:[#allocation3 + $0xb0] sm:$0xff] %v919
        %952 = vst [vmem:[#allocation3 + $0xb8] sm:$0xff] %v920
        %953 = vst [vmem:[#allocation3 + $0xc0] sm:$0xff] %v921
        %954 = vst [vmem:[#allocation3 + $0xc8] sm:$0xff] %v922
        %955 = vst [vmem:[#allocation3 + $0xd0] sm:$0xff] %v923
        %956 = vst [vmem:[#allocation3 + $0xd8] sm:$0xff] %v924
        %957 = vst [vmem:[#allocation3 + $0xe0] sm:$0xff] %v925
        %958 = vst [vmem:[#allocation3 + $0xe8] sm:$0xff] %v926
        %959 = vst [vmem:[#allocation3 + $0xf0] sm:$0xff] %v927
        %960 = vst [vmem:[#allocation3 + $0xf8] sm:$0xff] %v928
        %v961 = vpack.c.bf16 %v814, %v814
        %v962 = vpack.c.bf16 %v816, %v816
        %v963 = vpack.c.bf16 %v819, %v819
        %v964 = vpack.c.bf16 %v821, %v821
        %v965 = vpack.c.bf16 %v824, %v824
        %v966 = vpack.c.bf16 %v826, %v826
        %v967 = vpack.c.bf16 %v829, %v829
        %v968 = vpack.c.bf16 %v831, %v831
        %v969 = vpack.c.bf16 %v834, %v834
        %v970 = vpack.c.bf16 %v836, %v836
        %v971 = vpack.c.bf16 %v839, %v839
        %v972 = vpack.c.bf16 %v841, %v841
        %v973 = vpack.c.bf16 %v844, %v844
        %v974 = vpack.c.bf16 %v846, %v846
        %v975 = vpack.c.bf16 %v849, %v849
        %v976 = vpack.c.bf16 %v851, %v851
        %v977 = vpack.c.bf16 %v854, %v854
        %v978 = vpack.c.bf16 %v856, %v856
        %v979 = vpack.c.bf16 %v859, %v859
        %v980 = vpack.c.bf16 %v861, %v861
        %v981 = vpack.c.bf16 %v864, %v864
        %v982 = vpack.c.bf16 %v866, %v866
        %v983 = vpack.c.bf16 %v869, %v869
        %v984 = vpack.c.bf16 %v871, %v871
        %v985 = vpack.c.bf16 %v874, %v874
        %v986 = vpack.c.bf16 %v876, %v876
        %v987 = vpack.c.bf16 %v879, %v879
        %v988 = vpack.c.bf16 %v881, %v881
        %v989 = vpack.c.bf16 %v884, %v884
        %v990 = vpack.c.bf16 %v886, %v886
        %v991 = vpack.c.bf16 %v889, %v889
        %v992 = vpack.c.bf16 %v891, %v891
        %993 = vst [vmem:[#allocation4] sm:$0xf] %v961
        %994 = vst [vmem:[#allocation4 + $0x4] sm:$0xf] %v962
        %995 = vst [vmem:[#allocation4 + $0x8] sm:$0xf] %v963
        %996 = vst [vmem:[#allocation4 + $0xc] sm:$0xf] %v964
        %997 = vst [vmem:[#allocation4 + $0x10] sm:$0xf] %v965
        %998 = vst [vmem:[#allocation4 + $0x14] sm:$0xf] %v966
        %999 = vst [vmem:[#allocation4 + $0x18] sm:$0xf] %v967
        %1000 = vst [vmem:[#allocation4 + $0x1c] sm:$0xf] %v968
        %1001 = vst [vmem:[#allocation4 + $0x20] sm:$0xf] %v969
        %1002 = vst [vmem:[#allocation4 + $0x24] sm:$0xf] %v970
        %1003 = vst [vmem:[#allocation4 + $0x28] sm:$0xf] %v971
        %1004 = vst [vmem:[#allocation4 + $0x2c] sm:$0xf] %v972
        %1005 = vst [vmem:[#allocation4 + $0x30] sm:$0xf] %v973
        %1006 = vst [vmem:[#allocation4 + $0x34] sm:$0xf] %v974
        %1007 = vst [vmem:[#allocation4 + $0x38] sm:$0xf] %v975
        %1008 = vst [vmem:[#allocation4 + $0x3c] sm:$0xf] %v976
        %1009 = vst [vmem:[#allocation4 + $0x40] sm:$0xf] %v977
        %1010 = vst [vmem:[#allocation4 + $0x44] sm:$0xf] %v978
        %1011 = vst [vmem:[#allocation4 + $0x48] sm:$0xf] %v979
        %1012 = vst [vmem:[#allocation4 + $0x4c] sm:$0xf] %v980
        %1013 = vst [vmem:[#allocation4 + $0x50] sm:$0xf] %v981
        %1014 = vst [vmem:[#allocation4 + $0x54] sm:$0xf] %v982
        %1015 = vst [vmem:[#allocation4 + $0x58] sm:$0xf] %v983
        %1016 = vst [vmem:[#allocation4 + $0x5c] sm:$0xf] %v984
        %1017 = vst [vmem:[#allocation4 + $0x60] sm:$0xf] %v985
        %1018 = vst [vmem:[#allocation4 + $0x64] sm:$0xf] %v986
        %1019 = vst [vmem:[#allocation4 + $0x68] sm:$0xf] %v987
        %1020 = vst [vmem:[#allocation4 + $0x6c] sm:$0xf] %v988
        %1021 = vst [vmem:[#allocation4 + $0x70] sm:$0xf] %v989
        %1022 = vst [vmem:[#allocation4 + $0x74] sm:$0xf] %v990
        %1023 = vst [vmem:[#allocation4 + $0x78] sm:$0xf] %v991
        %1024 = vst [vmem:[#allocation4 + $0x7c] sm:$0xf] %v992
      $region68: #{graphsage_2_forward.1} parent=59 // pred_fallthru
        _
      %v1025 = vld [vmem:[%s402] sm:$0xff]
      %v1026 = vld [vmem:[%s402 + $0x8] sm:$0xff]
      %v1027 = vld [vmem:[%s402 + $0x10] sm:$0xff]
      %v1028 = vld [vmem:[%s402 + $0x18] sm:$0xff]
      %v1029 = vld [vmem:[%s402 + $0x20] sm:$0xff]
      %v1030 = vld [vmem:[%s402 + $0x28] sm:$0xff]
      %v1031 = vld [vmem:[%s402 + $0x30] sm:$0xff]
      %v1032 = vld [vmem:[%s402 + $0x38] sm:$0xff]
      %v1033 = vld [vmem:[%s402 + $0x40] sm:$0xff]
      %v1034 = vld [vmem:[%s402 + $0x48] sm:$0xff]
      %v1035 = vld [vmem:[%s402 + $0x50] sm:$0xff]
      %v1036 = vld [vmem:[%s402 + $0x58] sm:$0xff]
      %v1037 = vld [vmem:[%s402 + $0x60] sm:$0xff]
      %v1038 = vld [vmem:[%s402 + $0x68] sm:$0xff]
      %v1039 = vld [vmem:[%s402 + $0x70] sm:$0xff]
      %v1040 = vld [vmem:[%s402 + $0x78] sm:$0xff]
      %v1041 = vld [vmem:[%s402 + $0x80] sm:$0xff]
      %v1042 = vld [vmem:[%s402 + $0x88] sm:$0xff]
      %v1043 = vld [vmem:[%s402 + $0x90] sm:$0xff]
      %v1044 = vld [vmem:[%s402 + $0x98] sm:$0xff]
      %v1045 = vld [vmem:[%s402 + $0xa0] sm:$0xff]
      %v1046 = vld [vmem:[%s402 + $0xa8] sm:$0xff]
      %v1047 = vld [vmem:[%s402 + $0xb0] sm:$0xff]
      %v1048 = vld [vmem:[%s402 + $0xb8] sm:$0xff]
      %v1049 = vld [vmem:[%s402 + $0xc0] sm:$0xff]
      %v1050 = vld [vmem:[%s402 + $0xc8] sm:$0xff]
      %v1051 = vld [vmem:[%s402 + $0xd0] sm:$0xff]
      %v1052 = vld [vmem:[%s402 + $0xd8] sm:$0xff]
      %v1053 = vld [vmem:[%s402 + $0xe0] sm:$0xff]
      %v1054 = vld [vmem:[%s402 + $0xe8] sm:$0xff]
      %v1055 = vld [vmem:[%s402 + $0xf0] sm:$0xff]
      %v1056 = vld [vmem:[%s402 + $0xf8] sm:$0xff]
      %v1057 = vld [vmem:[#allocation4] sm:$0xf]
      %v1058 = vld [vmem:[#allocation4 + $0x4] sm:$0xf]
      %v1059 = vld [vmem:[#allocation4 + $0x8] sm:$0xf]
      %v1060 = vld [vmem:[#allocation4 + $0xc] sm:$0xf]
      %v1061 = vld [vmem:[#allocation4 + $0x10] sm:$0xf]
      %v1062 = vld [vmem:[#allocation4 + $0x14] sm:$0xf]
      %v1063 = vld [vmem:[#allocation4 + $0x18] sm:$0xf]
      %v1064 = vld [vmem:[#allocation4 + $0x1c] sm:$0xf]
      %v1065 = vld [vmem:[#allocation4 + $0x20] sm:$0xf]
      %v1066 = vld [vmem:[#allocation4 + $0x24] sm:$0xf]
      %v1067 = vld [vmem:[#allocation4 + $0x28] sm:$0xf]
      %v1068 = vld [vmem:[#allocation4 + $0x2c] sm:$0xf]
      %v1069 = vld [vmem:[#allocation4 + $0x30] sm:$0xf]
      %v1070 = vld [vmem:[#allocation4 + $0x34] sm:$0xf]
      %v1071 = vld [vmem:[#allocation4 + $0x38] sm:$0xf]
      %v1072 = vld [vmem:[#allocation4 + $0x3c] sm:$0xf]
      %v1073 = vld [vmem:[#allocation4 + $0x40] sm:$0xf]
      %v1074 = vld [vmem:[#allocation4 + $0x44] sm:$0xf]
      %v1075 = vld [vmem:[#allocation4 + $0x48] sm:$0xf]
      %v1076 = vld [vmem:[#allocation4 + $0x4c] sm:$0xf]
      %v1077 = vld [vmem:[#allocation4 + $0x50] sm:$0xf]
      %v1078 = vld [vmem:[#allocation4 + $0x54] sm:$0xf]
      %v1079 = vld [vmem:[#allocation4 + $0x58] sm:$0xf]
      %v1080 = vld [vmem:[#allocation4 + $0x5c] sm:$0xf]
      %v1081 = vld [vmem:[#allocation4 + $0x60] sm:$0xf]
      %v1082 = vld [vmem:[#allocation4 + $0x64] sm:$0xf]
      %v1083 = vld [vmem:[#allocation4 + $0x68] sm:$0xf]
      %v1084 = vld [vmem:[#allocation4 + $0x6c] sm:$0xf]
      %v1085 = vld [vmem:[#allocation4 + $0x70] sm:$0xf]
      %v1086 = vld [vmem:[#allocation4 + $0x74] sm:$0xf]
      %v1087 = vld [vmem:[#allocation4 + $0x78] sm:$0xf]
      %v1088 = vld [vmem:[#allocation4 + $0x7c] sm:$0xf]
      %v1121 = vunpack.c.l.b16 %v1025
      %v1122 = vunpack.c.h.b16 %v1025
      %v1123 = vunpack.c.l.b16 %v1026
      %v1124 = vunpack.c.h.b16 %v1026
      %v1125 = vunpack.c.l.b16 %v1027
      %v1126 = vunpack.c.h.b16 %v1027
      %v1127 = vunpack.c.l.b16 %v1028
      %v1128 = vunpack.c.h.b16 %v1028
      %v1129 = vunpack.c.l.b16 %v1029
      %v1130 = vunpack.c.h.b16 %v1029
      %v1131 = vunpack.c.l.b16 %v1030
      %v1132 = vunpack.c.h.b16 %v1030
      %v1133 = vunpack.c.l.b16 %v1031
      %v1134 = vunpack.c.h.b16 %v1031
      %v1135 = vunpack.c.l.b16 %v1032
      %v1136 = vunpack.c.h.b16 %v1032
      %v1137 = vunpack.c.l.b16 %v1033
      %v1138 = vunpack.c.h.b16 %v1033
      %v1139 = vunpack.c.l.b16 %v1034
      %v1140 = vunpack.c.h.b16 %v1034
      %v1141 = vunpack.c.l.b16 %v1035
      %v1142 = vunpack.c.h.b16 %v1035
      %v1143 = vunpack.c.l.b16 %v1036
      %v1144 = vunpack.c.h.b16 %v1036
      %v1145 = vunpack.c.l.b16 %v1037
      %v1146 = vunpack.c.h.b16 %v1037
      %v1147 = vunpack.c.l.b16 %v1038
      %v1148 = vunpack.c.h.b16 %v1038
      %v1149 = vunpack.c.l.b16 %v1039
      %v1150 = vunpack.c.h.b16 %v1039
      %v1151 = vunpack.c.l.b16 %v1040
      %v1152 = vunpack.c.h.b16 %v1040
      %v1153 = vunpack.c.l.b16 %v1041
      %v1154 = vunpack.c.h.b16 %v1041
      %v1155 = vunpack.c.l.b16 %v1042
      %v1156 = vunpack.c.h.b16 %v1042
      %v1157 = vunpack.c.l.b16 %v1043
      %v1158 = vunpack.c.h.b16 %v1043
      %v1159 = vunpack.c.l.b16 %v1044
      %v1160 = vunpack.c.h.b16 %v1044
      %v1161 = vunpack.c.l.b16 %v1045
      %v1162 = vunpack.c.h.b16 %v1045
      %v1163 = vunpack.c.l.b16 %v1046
      %v1164 = vunpack.c.h.b16 %v1046
      %v1165 = vunpack.c.l.b16 %v1047
      %v1166 = vunpack.c.h.b16 %v1047
      %v1167 = vunpack.c.l.b16 %v1048
      %v1168 = vunpack.c.h.b16 %v1048
      %v1169 = vunpack.c.l.b16 %v1049
      %v1170 = vunpack.c.h.b16 %v1049
      %v1171 = vunpack.c.l.b16 %v1050
      %v1172 = vunpack.c.h.b16 %v1050
      %v1173 = vunpack.c.l.b16 %v1051
      %v1174 = vunpack.c.h.b16 %v1051
      %v1175 = vunpack.c.l.b16 %v1052
      %v1176 = vunpack.c.h.b16 %v1052
      %v1177 = vunpack.c.l.b16 %v1053
      %v1178 = vunpack.c.h.b16 %v1053
      %v1179 = vunpack.c.l.b16 %v1054
      %v1180 = vunpack.c.h.b16 %v1054
      %v1181 = vunpack.c.l.b16 %v1055
      %v1182 = vunpack.c.h.b16 %v1055
      %v1183 = vunpack.c.l.b16 %v1056
      %v1184 = vunpack.c.h.b16 %v1056
      %v1185 = vpack.c.b16 %v1123, %v1121
      %v1186 = vpack.c.b16 %v1124, %v1122
      %v1187 = vpack.c.b16 %v1127, %v1125
      %v1188 = vpack.c.b16 %v1128, %v1126
      %v1189 = vpack.c.b16 %v1131, %v1129
      %v1190 = vpack.c.b16 %v1132, %v1130
      %v1191 = vpack.c.b16 %v1135, %v1133
      %v1192 = vpack.c.b16 %v1136, %v1134
      %v1193 = vpack.c.b16 %v1139, %v1137
      %v1194 = vpack.c.b16 %v1140, %v1138
      %v1195 = vpack.c.b16 %v1143, %v1141
      %v1196 = vpack.c.b16 %v1144, %v1142
      %v1197 = vpack.c.b16 %v1147, %v1145
      %v1198 = vpack.c.b16 %v1148, %v1146
      %v1199 = vpack.c.b16 %v1151, %v1149
      %v1200 = vpack.c.b16 %v1152, %v1150
      %v1201 = vpack.c.b16 %v1155, %v1153
      %v1202 = vpack.c.b16 %v1156, %v1154
      %v1203 = vpack.c.b16 %v1159, %v1157
      %v1204 = vpack.c.b16 %v1160, %v1158
      %v1205 = vpack.c.b16 %v1163, %v1161
      %v1206 = vpack.c.b16 %v1164, %v1162
      %v1207 = vpack.c.b16 %v1167, %v1165
      %v1208 = vpack.c.b16 %v1168, %v1166
      %v1209 = vpack.c.b16 %v1171, %v1169
      %v1210 = vpack.c.b16 %v1172, %v1170
      %v1211 = vpack.c.b16 %v1175, %v1173
      %v1212 = vpack.c.b16 %v1176, %v1174
      %v1213 = vpack.c.b16 %v1179, %v1177
      %v1214 = vpack.c.b16 %v1180, %v1178
      %v1215 = vpack.c.b16 %v1183, %v1181
      %v1216 = vpack.c.b16 %v1184, %v1182
      %v1281 = vunpack.c.l.b16 %v1057
      %v1282 = vunpack.c.l.b16 %v1058
      %v1283 = vunpack.c.l.b16 %v1059
      %v1284 = vunpack.c.l.b16 %v1060
      %v1285 = vunpack.c.l.b16 %v1061
      %v1286 = vunpack.c.l.b16 %v1062
      %v1287 = vunpack.c.l.b16 %v1063
      %v1288 = vunpack.c.l.b16 %v1064
      %v1289 = vunpack.c.l.b16 %v1065
      %v1290 = vunpack.c.l.b16 %v1066
      %v1291 = vunpack.c.l.b16 %v1067
      %v1292 = vunpack.c.l.b16 %v1068
      %v1293 = vunpack.c.l.b16 %v1069
      %v1294 = vunpack.c.l.b16 %v1070
      %v1295 = vunpack.c.l.b16 %v1071
      %v1296 = vunpack.c.l.b16 %v1072
      %v1297 = vunpack.c.l.b16 %v1073
      %v1298 = vunpack.c.l.b16 %v1074
      %v1299 = vunpack.c.l.b16 %v1075
      %v1300 = vunpack.c.l.b16 %v1076
      %v1301 = vunpack.c.l.b16 %v1077
      %v1302 = vunpack.c.l.b16 %v1078
      %v1303 = vunpack.c.l.b16 %v1079
      %v1304 = vunpack.c.l.b16 %v1080
      %v1305 = vunpack.c.l.b16 %v1081
      %v1306 = vunpack.c.l.b16 %v1082
      %v1307 = vunpack.c.l.b16 %v1083
      %v1308 = vunpack.c.l.b16 %v1084
      %v1309 = vunpack.c.l.b16 %v1085
      %v1310 = vunpack.c.l.b16 %v1086
      %v1311 = vunpack.c.l.b16 %v1087
      %v1312 = vunpack.c.l.b16 %v1088
      %v1313 = vpack.c.b16 %v1282, %v1281
      %v1314 = vpack.c.b16 %v1284, %v1283
      %v1315 = vpack.c.b16 %v1286, %v1285
      %v1316 = vpack.c.b16 %v1288, %v1287
      %v1317 = vpack.c.b16 %v1290, %v1289
      %v1318 = vpack.c.b16 %v1292, %v1291
      %v1319 = vpack.c.b16 %v1294, %v1293
      %v1320 = vpack.c.b16 %v1296, %v1295
      %v1321 = vpack.c.b16 %v1298, %v1297
      %v1322 = vpack.c.b16 %v1300, %v1299
      %v1323 = vpack.c.b16 %v1302, %v1301
      %v1324 = vpack.c.b16 %v1304, %v1303
      %v1325 = vpack.c.b16 %v1306, %v1305
      %v1326 = vpack.c.b16 %v1308, %v1307
      %v1327 = vpack.c.b16 %v1310, %v1309
      %v1328 = vpack.c.b16 %v1312, %v1311
      %1345 = vmatpush.bf16.msra.mxu0 %v1320
      %1346 = vmatpush.bf16.msra.mxu0 %v1319
      %1347 = vmatpush.bf16.msra.mxu0 %v1318
      %1348 = vmatpush.bf16.msra.mxu0 %v1317
      %1349 = vmatpush.bf16.msra.mxu0 %v1316
      %1350 = vmatpush.bf16.msra.mxu0 %v1315
      %1351 = vmatpush.bf16.msra.mxu0 %v1314
      %1352 = vmatpush.bf16.msra.mxu0 %v1313
      %1353 = vmatmul.bf16.gmra.mxu0 %v1185
      %v1354 = vpop.f32.mrf.mxu0
      %v1355 = vadd.f32 0.0, %v1354
      %v1356 = vpop.f32.mrf.mxu0
      %v1357 = vadd.f32 0.0, %v1356
      %1358 = vmatmul.bf16.gmra.mxu0 %v1187
      %v1359 = vpop.f32.mrf.mxu0
      %v1360 = vadd.f32 0.0, %v1359
      %v1361 = vpop.f32.mrf.mxu0
      %v1362 = vadd.f32 0.0, %v1361
      %1363 = vmatmul.bf16.gmra.mxu0 %v1189
      %v1364 = vpop.f32.mrf.mxu0
      %v1365 = vadd.f32 0.0, %v1364
      %v1366 = vpop.f32.mrf.mxu0
      %v1367 = vadd.f32 0.0, %v1366
      %1368 = vmatmul.bf16.gmra.mxu0 %v1191
      %v1369 = vpop.f32.mrf.mxu0
      %v1370 = vadd.f32 0.0, %v1369
      %v1371 = vpop.f32.mrf.mxu0
      %v1372 = vadd.f32 0.0, %v1371
      %1373 = vmatmul.bf16.gmra.mxu0 %v1193
      %v1374 = vpop.f32.mrf.mxu0
      %v1375 = vadd.f32 0.0, %v1374
      %v1376 = vpop.f32.mrf.mxu0
      %v1377 = vadd.f32 0.0, %v1376
      %1378 = vmatmul.bf16.gmra.mxu0 %v1195
      %v1379 = vpop.f32.mrf.mxu0
      %v1380 = vadd.f32 0.0, %v1379
      %v1381 = vpop.f32.mrf.mxu0
      %v1382 = vadd.f32 0.0, %v1381
      %1383 = vmatmul.bf16.gmra.mxu0 %v1197
      %v1384 = vpop.f32.mrf.mxu0
      %v1385 = vadd.f32 0.0, %v1384
      %v1386 = vpop.f32.mrf.mxu0
      %v1387 = vadd.f32 0.0, %v1386
      %1388 = vmatmul.bf16.gmra.mxu0 %v1199
      %v1389 = vpop.f32.mrf.mxu0
      %v1390 = vadd.f32 0.0, %v1389
      %v1391 = vpop.f32.mrf.mxu0
      %v1392 = vadd.f32 0.0, %v1391
      %1393 = vmatmul.bf16.gmra.mxu0 %v1201
      %v1394 = vpop.f32.mrf.mxu0
      %v1395 = vadd.f32 0.0, %v1394
      %v1396 = vpop.f32.mrf.mxu0
      %v1397 = vadd.f32 0.0, %v1396
      %1398 = vmatmul.bf16.gmra.mxu0 %v1203
      %v1399 = vpop.f32.mrf.mxu0
      %v1400 = vadd.f32 0.0, %v1399
      %v1401 = vpop.f32.mrf.mxu0
      %v1402 = vadd.f32 0.0, %v1401
      %1403 = vmatmul.bf16.gmra.mxu0 %v1205
      %v1404 = vpop.f32.mrf.mxu0
      %v1405 = vadd.f32 0.0, %v1404
      %v1406 = vpop.f32.mrf.mxu0
      %v1407 = vadd.f32 0.0, %v1406
      %1408 = vmatmul.bf16.gmra.mxu0 %v1207
      %v1409 = vpop.f32.mrf.mxu0
      %v1410 = vadd.f32 0.0, %v1409
      %v1411 = vpop.f32.mrf.mxu0
      %v1412 = vadd.f32 0.0, %v1411
      %1413 = vmatmul.bf16.gmra.mxu0 %v1209
      %v1414 = vpop.f32.mrf.mxu0
      %v1415 = vadd.f32 0.0, %v1414
      %v1416 = vpop.f32.mrf.mxu0
      %v1417 = vadd.f32 0.0, %v1416
      %1418 = vmatmul.bf16.gmra.mxu0 %v1211
      %v1419 = vpop.f32.mrf.mxu0
      %v1420 = vadd.f32 0.0, %v1419
      %v1421 = vpop.f32.mrf.mxu0
      %v1422 = vadd.f32 0.0, %v1421
      %1423 = vmatmul.bf16.gmra.mxu0 %v1213
      %v1424 = vpop.f32.mrf.mxu0
      %v1425 = vadd.f32 0.0, %v1424
      %v1426 = vpop.f32.mrf.mxu0
      %v1427 = vadd.f32 0.0, %v1426
      %1428 = vmatmul.bf16.gmra.mxu0 %v1215
      %v1429 = vpop.f32.mrf.mxu0
      %v1430 = vadd.f32 0.0, %v1429
      %v1431 = vpop.f32.mrf.mxu0
      %v1432 = vadd.f32 0.0, %v1431
      %1433 = vdwg.mxu0
      %1434 = vmatpush.bf16.msra.mxu0 %v1328
      %1435 = vmatpush.bf16.msra.mxu0 %v1327
      %1436 = vmatpush.bf16.msra.mxu0 %v1326
      %1437 = vmatpush.bf16.msra.mxu0 %v1325
      %1438 = vmatpush.bf16.msra.mxu0 %v1324
      %1439 = vmatpush.bf16.msra.mxu0 %v1323
      %1440 = vmatpush.bf16.msra.mxu0 %v1322
      %1441 = vmatpush.bf16.msra.mxu0 %v1321
      %1442 = vmatmul.bf16.gmra.mxu0 %v1186
      %v1443 = vpop.f32.mrf.mxu0
      %v1444 = vadd.f32 %v1355, %v1443
      %v1445 = vpop.f32.mrf.mxu0
      %v1446 = vadd.f32 %v1357, %v1445
      %1447 = vmatmul.bf16.gmra.mxu0 %v1188
      %v1448 = vpop.f32.mrf.mxu0
      %v1449 = vadd.f32 %v1360, %v1448
      %v1450 = vpop.f32.mrf.mxu0
      %v1451 = vadd.f32 %v1362, %v1450
      %1452 = vmatmul.bf16.gmra.mxu0 %v1190
      %v1453 = vpop.f32.mrf.mxu0
      %v1454 = vadd.f32 %v1365, %v1453
      %v1455 = vpop.f32.mrf.mxu0
      %v1456 = vadd.f32 %v1367, %v1455
      %1457 = vmatmul.bf16.gmra.mxu0 %v1192
      %v1458 = vpop.f32.mrf.mxu0
      %v1459 = vadd.f32 %v1370, %v1458
      %v1460 = vpop.f32.mrf.mxu0
      %v1461 = vadd.f32 %v1372, %v1460
      %1462 = vmatmul.bf16.gmra.mxu0 %v1194
      %v1463 = vpop.f32.mrf.mxu0
      %v1464 = vadd.f32 %v1375, %v1463
      %v1465 = vpop.f32.mrf.mxu0
      %v1466 = vadd.f32 %v1377, %v1465
      %1467 = vmatmul.bf16.gmra.mxu0 %v1196
      %v1468 = vpop.f32.mrf.mxu0
      %v1469 = vadd.f32 %v1380, %v1468
      %v1470 = vpop.f32.mrf.mxu0
      %v1471 = vadd.f32 %v1382, %v1470
      %1472 = vmatmul.bf16.gmra.mxu0 %v1198
      %v1473 = vpop.f32.mrf.mxu0
      %v1474 = vadd.f32 %v1385, %v1473
      %v1475 = vpop.f32.mrf.mxu0
      %v1476 = vadd.f32 %v1387, %v1475
      %1477 = vmatmul.bf16.gmra.mxu0 %v1200
      %v1478 = vpop.f32.mrf.mxu0
      %v1479 = vadd.f32 %v1390, %v1478
      %v1480 = vpop.f32.mrf.mxu0
      %v1481 = vadd.f32 %v1392, %v1480
      %1482 = vmatmul.bf16.gmra.mxu0 %v1202
      %v1483 = vpop.f32.mrf.mxu0
      %v1484 = vadd.f32 %v1395, %v1483
      %v1485 = vpop.f32.mrf.mxu0
      %v1486 = vadd.f32 %v1397, %v1485
      %1487 = vmatmul.bf16.gmra.mxu0 %v1204
      %v1488 = vpop.f32.mrf.mxu0
      %v1489 = vadd.f32 %v1400, %v1488
      %v1490 = vpop.f32.mrf.mxu0
      %v1491 = vadd.f32 %v1402, %v1490
      %1492 = vmatmul.bf16.gmra.mxu0 %v1206
      %v1493 = vpop.f32.mrf.mxu0
      %v1494 = vadd.f32 %v1405, %v1493
      %v1495 = vpop.f32.mrf.mxu0
      %v1496 = vadd.f32 %v1407, %v1495
      %1497 = vmatmul.bf16.gmra.mxu0 %v1208
      %v1498 = vpop.f32.mrf.mxu0
      %v1499 = vadd.f32 %v1410, %v1498
      %v1500 = vpop.f32.mrf.mxu0
      %v1501 = vadd.f32 %v1412, %v1500
      %1502 = vmatmul.bf16.gmra.mxu0 %v1210
      %v1503 = vpop.f32.mrf.mxu0
      %v1504 = vadd.f32 %v1415, %v1503
      %v1505 = vpop.f32.mrf.mxu0
      %v1506 = vadd.f32 %v1417, %v1505
      %1507 = vmatmul.bf16.gmra.mxu0 %v1212
      %v1508 = vpop.f32.mrf.mxu0
      %v1509 = vadd.f32 %v1420, %v1508
      %v1510 = vpop.f32.mrf.mxu0
      %v1511 = vadd.f32 %v1422, %v1510
      %1512 = vmatmul.bf16.gmra.mxu0 %v1214
      %v1513 = vpop.f32.mrf.mxu0
      %v1514 = vadd.f32 %v1425, %v1513
      %v1515 = vpop.f32.mrf.mxu0
      %v1516 = vadd.f32 %v1427, %v1515
      %1517 = vmatmul.bf16.gmra.mxu0 %v1216
      %v1518 = vpop.f32.mrf.mxu0
      %v1519 = vadd.f32 %v1430, %v1518
      %v1520 = vpop.f32.mrf.mxu0
      %v1521 = vadd.f32 %v1432, %v1520
      %1522 = vdwg.mxu0
      %s1523 = smul.u32 %s26, 256
      %s1524 = scalar_lea.vmem [#allocation3], %s1523
      %v1525 = vld [vmem:[%s1524] sm:$0xff]
      %v1526 = vld [vmem:[%s1524 + $0x8] sm:$0xff]
      %v1527 = vld [vmem:[%s1524 + $0x10] sm:$0xff]
      %v1528 = vld [vmem:[%s1524 + $0x18] sm:$0xff]
      %v1529 = vld [vmem:[%s1524 + $0x20] sm:$0xff]
      %v1530 = vld [vmem:[%s1524 + $0x28] sm:$0xff]
      %v1531 = vld [vmem:[%s1524 + $0x30] sm:$0xff]
      %v1532 = vld [vmem:[%s1524 + $0x38] sm:$0xff]
      %v1533 = vld [vmem:[%s1524 + $0x40] sm:$0xff]
      %v1534 = vld [vmem:[%s1524 + $0x48] sm:$0xff]
      %v1535 = vld [vmem:[%s1524 + $0x50] sm:$0xff]
      %v1536 = vld [vmem:[%s1524 + $0x58] sm:$0xff]
      %v1537 = vld [vmem:[%s1524 + $0x60] sm:$0xff]
      %v1538 = vld [vmem:[%s1524 + $0x68] sm:$0xff]
      %v1539 = vld [vmem:[%s1524 + $0x70] sm:$0xff]
      %v1540 = vld [vmem:[%s1524 + $0x78] sm:$0xff]
      %v1541 = vld [vmem:[%s1524 + $0x80] sm:$0xff]
      %v1542 = vld [vmem:[%s1524 + $0x88] sm:$0xff]
      %v1543 = vld [vmem:[%s1524 + $0x90] sm:$0xff]
      %v1544 = vld [vmem:[%s1524 + $0x98] sm:$0xff]
      %v1545 = vld [vmem:[%s1524 + $0xa0] sm:$0xff]
      %v1546 = vld [vmem:[%s1524 + $0xa8] sm:$0xff]
      %v1547 = vld [vmem:[%s1524 + $0xb0] sm:$0xff]
      %v1548 = vld [vmem:[%s1524 + $0xb8] sm:$0xff]
      %v1549 = vld [vmem:[%s1524 + $0xc0] sm:$0xff]
      %v1550 = vld [vmem:[%s1524 + $0xc8] sm:$0xff]
      %v1551 = vld [vmem:[%s1524 + $0xd0] sm:$0xff]
      %v1552 = vld [vmem:[%s1524 + $0xd8] sm:$0xff]
      %v1553 = vld [vmem:[%s1524 + $0xe0] sm:$0xff]
      %v1554 = vld [vmem:[%s1524 + $0xe8] sm:$0xff]
      %v1555 = vld [vmem:[%s1524 + $0xf0] sm:$0xff]
      %v1556 = vld [vmem:[%s1524 + $0xf8] sm:$0xff]
      %v1557 = vld [vmem:[%s416] sm:$0xff]
      %v1558 = vld [vmem:[%s416 + $0x8] sm:$0xff]
      %v1559 = vld [vmem:[%s416 + $0x10] sm:$0xff]
      %v1560 = vld [vmem:[%s416 + $0x18] sm:$0xff]
      %v1561 = vld [vmem:[%s416 + $0x20] sm:$0xff]
      %v1562 = vld [vmem:[%s416 + $0x28] sm:$0xff]
      %v1563 = vld [vmem:[%s416 + $0x30] sm:$0xff]
      %v1564 = vld [vmem:[%s416 + $0x38] sm:$0xff]
      %v1565 = vld [vmem:[%s416 + $0x40] sm:$0xff]
      %v1566 = vld [vmem:[%s416 + $0x48] sm:$0xff]
      %v1567 = vld [vmem:[%s416 + $0x50] sm:$0xff]
      %v1568 = vld [vmem:[%s416 + $0x58] sm:$0xff]
      %v1569 = vld [vmem:[%s416 + $0x60] sm:$0xff]
      %v1570 = vld [vmem:[%s416 + $0x68] sm:$0xff]
      %v1571 = vld [vmem:[%s416 + $0x70] sm:$0xff]
      %v1572 = vld [vmem:[%s416 + $0x78] sm:$0xff]
      %v1573 = vld [vmem:[%s416 + $0x80] sm:$0xff]
      %v1574 = vld [vmem:[%s416 + $0x88] sm:$0xff]
      %v1575 = vld [vmem:[%s416 + $0x90] sm:$0xff]
      %v1576 = vld [vmem:[%s416 + $0x98] sm:$0xff]
      %v1577 = vld [vmem:[%s416 + $0xa0] sm:$0xff]
      %v1578 = vld [vmem:[%s416 + $0xa8] sm:$0xff]
      %v1579 = vld [vmem:[%s416 + $0xb0] sm:$0xff]
      %v1580 = vld [vmem:[%s416 + $0xb8] sm:$0xff]
      %v1581 = vld [vmem:[%s416 + $0xc0] sm:$0xff]
      %v1582 = vld [vmem:[%s416 + $0xc8] sm:$0xff]
      %v1583 = vld [vmem:[%s416 + $0xd0] sm:$0xff]
      %v1584 = vld [vmem:[%s416 + $0xd8] sm:$0xff]
      %v1585 = vld [vmem:[%s416 + $0xe0] sm:$0xff]
      %v1586 = vld [vmem:[%s416 + $0xe8] sm:$0xff]
      %v1587 = vld [vmem:[%s416 + $0xf0] sm:$0xff]
      %v1588 = vld [vmem:[%s416 + $0xf8] sm:$0xff]
      %1590 = vset.pattern.permute.xlu0 0
      %1591 = vperm.xlu0 %1590, %v1557
      %v1592 = vpop.permute.xlu0 %1591
      %1595 = vset.pattern.permute.xlu0 0
      %1596 = vperm.xlu0 %1595, %v1558
      %v1597 = vpop.permute.xlu0 %1596
      %1600 = vset.pattern.permute.xlu0 0
      %1601 = vperm.xlu0 %1600, %v1559
      %v1602 = vpop.permute.xlu0 %1601
      %1605 = vset.pattern.permute.xlu0 0
      %1606 = vperm.xlu0 %1605, %v1560
      %v1607 = vpop.permute.xlu0 %1606
      %1610 = vset.pattern.permute.xlu0 0
      %1611 = vperm.xlu0 %1610, %v1561
      %v1612 = vpop.permute.xlu0 %1611
      %1615 = vset.pattern.permute.xlu0 0
      %1616 = vperm.xlu0 %1615, %v1562
      %v1617 = vpop.permute.xlu0 %1616
      %1620 = vset.pattern.permute.xlu0 0
      %1621 = vperm.xlu0 %1620, %v1563
      %v1622 = vpop.permute.xlu0 %1621
      %1625 = vset.pattern.permute.xlu0 0
      %1626 = vperm.xlu0 %1625, %v1564
      %v1627 = vpop.permute.xlu0 %1626
      %1630 = vset.pattern.permute.xlu0 0
      %1631 = vperm.xlu0 %1630, %v1565
      %v1632 = vpop.permute.xlu0 %1631
      %1635 = vset.pattern.permute.xlu0 0
      %1636 = vperm.xlu0 %1635, %v1566
      %v1637 = vpop.permute.xlu0 %1636
      %1640 = vset.pattern.permute.xlu0 0
      %1641 = vperm.xlu0 %1640, %v1567
      %v1642 = vpop.permute.xlu0 %1641
      %1645 = vset.pattern.permute.xlu0 0
      %1646 = vperm.xlu0 %1645, %v1568
      %v1647 = vpop.permute.xlu0 %1646
      %1650 = vset.pattern.permute.xlu0 0
      %1651 = vperm.xlu0 %1650, %v1569
      %v1652 = vpop.permute.xlu0 %1651
      %1655 = vset.pattern.permute.xlu0 0
      %1656 = vperm.xlu0 %1655, %v1570
      %v1657 = vpop.permute.xlu0 %1656
      %1660 = vset.pattern.permute.xlu0 0
      %1661 = vperm.xlu0 %1660, %v1571
      %v1662 = vpop.permute.xlu0 %1661
      %1665 = vset.pattern.permute.xlu0 0
      %1666 = vperm.xlu0 %1665, %v1572
      %v1667 = vpop.permute.xlu0 %1666
      %1670 = vset.pattern.permute.xlu0 0
      %1671 = vperm.xlu0 %1670, %v1573
      %v1672 = vpop.permute.xlu0 %1671
      %1675 = vset.pattern.permute.xlu0 0
      %1676 = vperm.xlu0 %1675, %v1574
      %v1677 = vpop.permute.xlu0 %1676
      %1680 = vset.pattern.permute.xlu0 0
      %1681 = vperm.xlu0 %1680, %v1575
      %v1682 = vpop.permute.xlu0 %1681
      %1685 = vset.pattern.permute.xlu0 0
      %1686 = vperm.xlu0 %1685, %v1576
      %v1687 = vpop.permute.xlu0 %1686
      %1690 = vset.pattern.permute.xlu0 0
      %1691 = vperm.xlu0 %1690, %v1577
      %v1692 = vpop.permute.xlu0 %1691
      %1695 = vset.pattern.permute.xlu0 0
      %1696 = vperm.xlu0 %1695, %v1578
      %v1697 = vpop.permute.xlu0 %1696
      %1700 = vset.pattern.permute.xlu0 0
      %1701 = vperm.xlu0 %1700, %v1579
      %v1702 = vpop.permute.xlu0 %1701
      %1705 = vset.pattern.permute.xlu0 0
      %1706 = vperm.xlu0 %1705, %v1580
      %v1707 = vpop.permute.xlu0 %1706
      %1710 = vset.pattern.permute.xlu0 0
      %1711 = vperm.xlu0 %1710, %v1581
      %v1712 = vpop.permute.xlu0 %1711
      %1715 = vset.pattern.permute.xlu0 0
      %1716 = vperm.xlu0 %1715, %v1582
      %v1717 = vpop.permute.xlu0 %1716
      %1720 = vset.pattern.permute.xlu0 0
      %1721 = vperm.xlu0 %1720, %v1583
      %v1722 = vpop.permute.xlu0 %1721
      %1725 = vset.pattern.permute.xlu0 0
      %1726 = vperm.xlu0 %1725, %v1584
      %v1727 = vpop.permute.xlu0 %1726
      %1730 = vset.pattern.permute.xlu0 0
      %1731 = vperm.xlu0 %1730, %v1585
      %v1732 = vpop.permute.xlu0 %1731
      %1735 = vset.pattern.permute.xlu0 0
      %1736 = vperm.xlu0 %1735, %v1586
      %v1737 = vpop.permute.xlu0 %1736
      %1740 = vset.pattern.permute.xlu0 0
      %1741 = vperm.xlu0 %1740, %v1587
      %v1742 = vpop.permute.xlu0 %1741
      %1745 = vset.pattern.permute.xlu0 0
      %1746 = vperm.xlu0 %1745, %v1588
      %v1747 = vpop.permute.xlu0 %1746
      %v1749 = vmul.f32 %v1444, %v1592
      %v1750 = vmul.f32 %v1446, %v1597
      %v1751 = vmul.f32 %v1449, %v1602
      %v1752 = vmul.f32 %v1451, %v1607
      %v1753 = vmul.f32 %v1454, %v1612
      %v1754 = vmul.f32 %v1456, %v1617
      %v1755 = vmul.f32 %v1459, %v1622
      %v1756 = vmul.f32 %v1461, %v1627
      %v1757 = vmul.f32 %v1464, %v1632
      %v1758 = vmul.f32 %v1466, %v1637
      %v1759 = vmul.f32 %v1469, %v1642
      %v1760 = vmul.f32 %v1471, %v1647
      %v1761 = vmul.f32 %v1474, %v1652
      %v1762 = vmul.f32 %v1476, %v1657
      %v1763 = vmul.f32 %v1479, %v1662
      %v1764 = vmul.f32 %v1481, %v1667
      %v1765 = vmul.f32 %v1484, %v1672
      %v1766 = vmul.f32 %v1486, %v1677
      %v1767 = vmul.f32 %v1489, %v1682
      %v1768 = vmul.f32 %v1491, %v1687
      %v1769 = vmul.f32 %v1494, %v1692
      %v1770 = vmul.f32 %v1496, %v1697
      %v1771 = vmul.f32 %v1499, %v1702
      %v1772 = vmul.f32 %v1501, %v1707
      %v1773 = vmul.f32 %v1504, %v1712
      %v1774 = vmul.f32 %v1506, %v1717
      %v1775 = vmul.f32 %v1509, %v1722
      %v1776 = vmul.f32 %v1511, %v1727
      %v1777 = vmul.f32 %v1514, %v1732
      %v1778 = vmul.f32 %v1516, %v1737
      %v1779 = vmul.f32 %v1519, %v1742
      %v1780 = vmul.f32 %v1521, %v1747
      %v1781 = vadd.f32 %v1525, %v1749
      %v1782 = vadd.f32 %v1526, %v1750
      %v1783 = vadd.f32 %v1527, %v1751
      %v1784 = vadd.f32 %v1528, %v1752
      %v1785 = vadd.f32 %v1529, %v1753
      %v1786 = vadd.f32 %v1530, %v1754
      %v1787 = vadd.f32 %v1531, %v1755
      %v1788 = vadd.f32 %v1532, %v1756
      %v1789 = vadd.f32 %v1533, %v1757
      %v1790 = vadd.f32 %v1534, %v1758
      %v1791 = vadd.f32 %v1535, %v1759
      %v1792 = vadd.f32 %v1536, %v1760
      %v1793 = vadd.f32 %v1537, %v1761
      %v1794 = vadd.f32 %v1538, %v1762
      %v1795 = vadd.f32 %v1539, %v1763
      %v1796 = vadd.f32 %v1540, %v1764
      %v1797 = vadd.f32 %v1541, %v1765
      %v1798 = vadd.f32 %v1542, %v1766
      %v1799 = vadd.f32 %v1543, %v1767
      %v1800 = vadd.f32 %v1544, %v1768
      %v1801 = vadd.f32 %v1545, %v1769
      %v1802 = vadd.f32 %v1546, %v1770
      %v1803 = vadd.f32 %v1547, %v1771
      %v1804 = vadd.f32 %v1548, %v1772
      %v1805 = vadd.f32 %v1549, %v1773
      %v1806 = vadd.f32 %v1550, %v1774
      %v1807 = vadd.f32 %v1551, %v1775
      %v1808 = vadd.f32 %v1552, %v1776
      %v1809 = vadd.f32 %v1553, %v1777
      %v1810 = vadd.f32 %v1554, %v1778
      %v1811 = vadd.f32 %v1555, %v1779
      %v1812 = vadd.f32 %v1556, %v1780
      %v1813 = vmax.f32 %v1781, 0.0
      %v1814 = vmax.f32 %v1782, 0.0
      %v1815 = vmax.f32 %v1783, 0.0
      %v1816 = vmax.f32 %v1784, 0.0
      %v1817 = vmax.f32 %v1785, 0.0
      %v1818 = vmax.f32 %v1786, 0.0
      %v1819 = vmax.f32 %v1787, 0.0
      %v1820 = vmax.f32 %v1788, 0.0
      %v1821 = vmax.f32 %v1789, 0.0
      %v1822 = vmax.f32 %v1790, 0.0
      %v1823 = vmax.f32 %v1791, 0.0
      %v1824 = vmax.f32 %v1792, 0.0
      %v1825 = vmax.f32 %v1793, 0.0
      %v1826 = vmax.f32 %v1794, 0.0
      %v1827 = vmax.f32 %v1795, 0.0
      %v1828 = vmax.f32 %v1796, 0.0
      %v1829 = vmax.f32 %v1797, 0.0
      %v1830 = vmax.f32 %v1798, 0.0
      %v1831 = vmax.f32 %v1799, 0.0
      %v1832 = vmax.f32 %v1800, 0.0
      %v1833 = vmax.f32 %v1801, 0.0
      %v1834 = vmax.f32 %v1802, 0.0
      %v1835 = vmax.f32 %v1803, 0.0
      %v1836 = vmax.f32 %v1804, 0.0
      %v1837 = vmax.f32 %v1805, 0.0
      %v1838 = vmax.f32 %v1806, 0.0
      %v1839 = vmax.f32 %v1807, 0.0
      %v1840 = vmax.f32 %v1808, 0.0
      %v1841 = vmax.f32 %v1809, 0.0
      %v1842 = vmax.f32 %v1810, 0.0
      %v1843 = vmax.f32 %v1811, 0.0
      %v1844 = vmax.f32 %v1812, 0.0
      %v1845 = vpack.c.bf16 %v1813, %v1813
      %v1846 = vpack.c.bf16 %v1814, %v1814
      %v1847 = vpack.c.bf16 %v1815, %v1815
      %v1848 = vpack.c.bf16 %v1816, %v1816
      %v1849 = vpack.c.bf16 %v1817, %v1817
      %v1850 = vpack.c.bf16 %v1818, %v1818
      %v1851 = vpack.c.bf16 %v1819, %v1819
      %v1852 = vpack.c.bf16 %v1820, %v1820
      %v1853 = vpack.c.bf16 %v1821, %v1821
      %v1854 = vpack.c.bf16 %v1822, %v1822
      %v1855 = vpack.c.bf16 %v1823, %v1823
      %v1856 = vpack.c.bf16 %v1824, %v1824
      %v1857 = vpack.c.bf16 %v1825, %v1825
      %v1858 = vpack.c.bf16 %v1826, %v1826
      %v1859 = vpack.c.bf16 %v1827, %v1827
      %v1860 = vpack.c.bf16 %v1828, %v1828
      %v1861 = vpack.c.bf16 %v1829, %v1829
      %v1862 = vpack.c.bf16 %v1830, %v1830
      %v1863 = vpack.c.bf16 %v1831, %v1831
      %v1864 = vpack.c.bf16 %v1832, %v1832
      %v1865 = vpack.c.bf16 %v1833, %v1833
      %v1866 = vpack.c.bf16 %v1834, %v1834
      %v1867 = vpack.c.bf16 %v1835, %v1835
      %v1868 = vpack.c.bf16 %v1836, %v1836
      %v1869 = vpack.c.bf16 %v1837, %v1837
      %v1870 = vpack.c.bf16 %v1838, %v1838
      %v1871 = vpack.c.bf16 %v1839, %v1839
      %v1872 = vpack.c.bf16 %v1840, %v1840
      %v1873 = vpack.c.bf16 %v1841, %v1841
      %v1874 = vpack.c.bf16 %v1842, %v1842
      %v1875 = vpack.c.bf16 %v1843, %v1843
      %v1876 = vpack.c.bf16 %v1844, %v1844
      %s1877 = sshra.s32 %s1523, 3
      %s1878 = sand.u32 %s1523, 7
      %s1879 = smul.addr %s1877, 4
      %s1880 = scalar_lea.vmem [#allocation2], %s1879
      %1881 = vst [vmem:[%s1880] sm:$0xf] %v1845
      %1882 = vst [vmem:[%s1880 + $0x4] sm:$0xf] %v1846
      %1883 = vst [vmem:[%s1880 + $0x8] sm:$0xf] %v1847
      %1884 = vst [vmem:[%s1880 + $0xc] sm:$0xf] %v1848
      %1885 = vst [vmem:[%s1880 + $0x10] sm:$0xf] %v1849
      %1886 = vst [vmem:[%s1880 + $0x14] sm:$0xf] %v1850
      %1887 = vst [vmem:[%s1880 + $0x18] sm:$0xf] %v1851
      %1888 = vst [vmem:[%s1880 + $0x1c] sm:$0xf] %v1852
      %1889 = vst [vmem:[%s1880 + $0x20] sm:$0xf] %v1853
      %1890 = vst [vmem:[%s1880 + $0x24] sm:$0xf] %v1854
      %1891 = vst [vmem:[%s1880 + $0x28] sm:$0xf] %v1855
      %1892 = vst [vmem:[%s1880 + $0x2c] sm:$0xf] %v1856
      %1893 = vst [vmem:[%s1880 + $0x30] sm:$0xf] %v1857
      %1894 = vst [vmem:[%s1880 + $0x34] sm:$0xf] %v1858
      %1895 = vst [vmem:[%s1880 + $0x38] sm:$0xf] %v1859
      %1896 = vst [vmem:[%s1880 + $0x3c] sm:$0xf] %v1860
      %1897 = vst [vmem:[%s1880 + $0x40] sm:$0xf] %v1861
      %1898 = vst [vmem:[%s1880 + $0x44] sm:$0xf] %v1862
      %1899 = vst [vmem:[%s1880 + $0x48] sm:$0xf] %v1863
      %1900 = vst [vmem:[%s1880 + $0x4c] sm:$0xf] %v1864
      %1901 = vst [vmem:[%s1880 + $0x50] sm:$0xf] %v1865
      %1902 = vst [vmem:[%s1880 + $0x54] sm:$0xf] %v1866
      %1903 = vst [vmem:[%s1880 + $0x58] sm:$0xf] %v1867
      %1904 = vst [vmem:[%s1880 + $0x5c] sm:$0xf] %v1868
      %1905 = vst [vmem:[%s1880 + $0x60] sm:$0xf] %v1869
      %1906 = vst [vmem:[%s1880 + $0x64] sm:$0xf] %v1870
      %1907 = vst [vmem:[%s1880 + $0x68] sm:$0xf] %v1871
      %1908 = vst [vmem:[%s1880 + $0x6c] sm:$0xf] %v1872
      %1909 = vst [vmem:[%s1880 + $0x70] sm:$0xf] %v1873
      %1910 = vst [vmem:[%s1880 + $0x74] sm:$0xf] %v1874
      %1911 = vst [vmem:[%s1880 + $0x78] sm:$0xf] %v1875
      %1912 = vst [vmem:[%s1880 + $0x7c] sm:$0xf] %v1876
      %p1913 = scmp.eq.s32.totalorder %s25, 1
      %p1914 = pnand %p1913, %p419
      %p1915 = pneg %p1914
      // Predicated region
      $region69: #{graphsage_2_forward.1} parent=59 // pred_check
        _
      $region70: #{graphsage_2_forward.1} parent=59 // pred_check_branch
        %1917 = sbr.rel (%p1914) target = $region72
      $region71: #{graphsage_2_forward.1} parent=59 // pred_region
        %v1918 = vld [vmem:[%s5] sm:$0xff]
        %v1919 = vld [vmem:[#allocation2] sm:$0xf]
        %v1920 = vld [vmem:[#allocation2 + $0x4] sm:$0xf]
        %v1921 = vld [vmem:[#allocation2 + $0x8] sm:$0xf]
        %v1922 = vld [vmem:[#allocation2 + $0xc] sm:$0xf]
        %v1923 = vld [vmem:[#allocation2 + $0x10] sm:$0xf]
        %v1924 = vld [vmem:[#allocation2 + $0x14] sm:$0xf]
        %v1925 = vld [vmem:[#allocation2 + $0x18] sm:$0xf]
        %v1926 = vld [vmem:[#allocation2 + $0x1c] sm:$0xf]
        %v1927 = vld [vmem:[#allocation2 + $0x20] sm:$0xf]
        %v1928 = vld [vmem:[#allocation2 + $0x24] sm:$0xf]
        %v1929 = vld [vmem:[#allocation2 + $0x28] sm:$0xf]
        %v1930 = vld [vmem:[#allocation2 + $0x2c] sm:$0xf]
        %v1931 = vld [vmem:[#allocation2 + $0x30] sm:$0xf]
        %v1932 = vld [vmem:[#allocation2 + $0x34] sm:$0xf]
        %v1933 = vld [vmem:[#allocation2 + $0x38] sm:$0xf]
        %v1934 = vld [vmem:[#allocation2 + $0x3c] sm:$0xf]
        %v1935 = vld [vmem:[#allocation2 + $0x40] sm:$0xf]
        %v1936 = vld [vmem:[#allocation2 + $0x44] sm:$0xf]
        %v1937 = vld [vmem:[#allocation2 + $0x48] sm:$0xf]
        %v1938 = vld [vmem:[#allocation2 + $0x4c] sm:$0xf]
        %v1939 = vld [vmem:[#allocation2 + $0x50] sm:$0xf]
        %v1940 = vld [vmem:[#allocation2 + $0x54] sm:$0xf]
        %v1941 = vld [vmem:[#allocation2 + $0x58] sm:$0xf]
        %v1942 = vld [vmem:[#allocation2 + $0x5c] sm:$0xf]
        %v1943 = vld [vmem:[#allocation2 + $0x60] sm:$0xf]
        %v1944 = vld [vmem:[#allocation2 + $0x64] sm:$0xf]
        %v1945 = vld [vmem:[#allocation2 + $0x68] sm:$0xf]
        %v1946 = vld [vmem:[#allocation2 + $0x6c] sm:$0xf]
        %v1947 = vld [vmem:[#allocation2 + $0x70] sm:$0xf]
        %v1948 = vld [vmem:[#allocation2 + $0x74] sm:$0xf]
        %v1949 = vld [vmem:[#allocation2 + $0x78] sm:$0xf]
        %v1950 = vld [vmem:[#allocation2 + $0x7c] sm:$0xf]
        %v1952 = vunpack.c.l.b16 %v1918
        %v1953 = vunpack.c.h.b16 %v1918
        %v1954 = vpack.c.b16 %v1952, %v1952
        %v1955 = vpack.c.b16 %v1953, %v1953
        %v1990 = vunpack.c.l.b16 %v1919
        %v1991 = vunpack.c.l.b16 %v1920
        %v1992 = vunpack.c.l.b16 %v1921
        %v1993 = vunpack.c.l.b16 %v1922
        %v1994 = vunpack.c.l.b16 %v1923
        %v1995 = vunpack.c.l.b16 %v1924
        %v1996 = vunpack.c.l.b16 %v1925
        %v1997 = vunpack.c.l.b16 %v1926
        %v1998 = vunpack.c.l.b16 %v1927
        %v1999 = vunpack.c.l.b16 %v1928
        %v2000 = vunpack.c.l.b16 %v1929
        %v2001 = vunpack.c.l.b16 %v1930
        %v2002 = vunpack.c.l.b16 %v1931
        %v2003 = vunpack.c.l.b16 %v1932
        %v2004 = vunpack.c.l.b16 %v1933
        %v2005 = vunpack.c.l.b16 %v1934
        %v2006 = vunpack.c.l.b16 %v1935
        %v2007 = vunpack.c.l.b16 %v1936
        %v2008 = vunpack.c.l.b16 %v1937
        %v2009 = vunpack.c.l.b16 %v1938
        %v2010 = vunpack.c.l.b16 %v1939
        %v2011 = vunpack.c.l.b16 %v1940
        %v2012 = vunpack.c.l.b16 %v1941
        %v2013 = vunpack.c.l.b16 %v1942
        %v2014 = vunpack.c.l.b16 %v1943
        %v2015 = vunpack.c.l.b16 %v1944
        %v2016 = vunpack.c.l.b16 %v1945
        %v2017 = vunpack.c.l.b16 %v1946
        %v2018 = vunpack.c.l.b16 %v1947
        %v2019 = vunpack.c.l.b16 %v1948
        %v2020 = vunpack.c.l.b16 %v1949
        %v2021 = vunpack.c.l.b16 %v1950
        %v2022 = vpack.c.b16 %v1991, %v1990
        %v2023 = vpack.c.b16 %v1993, %v1992
        %v2024 = vpack.c.b16 %v1995, %v1994
        %v2025 = vpack.c.b16 %v1997, %v1996
        %v2026 = vpack.c.b16 %v1999, %v1998
        %v2027 = vpack.c.b16 %v2001, %v2000
        %v2028 = vpack.c.b16 %v2003, %v2002
        %v2029 = vpack.c.b16 %v2005, %v2004
        %v2030 = vpack.c.b16 %v2007, %v2006
        %v2031 = vpack.c.b16 %v2009, %v2008
        %v2032 = vpack.c.b16 %v2011, %v2010
        %v2033 = vpack.c.b16 %v2013, %v2012
        %v2034 = vpack.c.b16 %v2015, %v2014
        %v2035 = vpack.c.b16 %v2017, %v2016
        %v2036 = vpack.c.b16 %v2019, %v2018
        %v2037 = vpack.c.b16 %v2021, %v2020
        %2054 = vmatpush.bf16.msra.mxu0 %v2029
        %2055 = vmatpush.bf16.msra.mxu0 %v2028
        %2056 = vmatpush.bf16.msra.mxu0 %v2027
        %2057 = vmatpush.bf16.msra.mxu0 %v2026
        %2058 = vmatpush.bf16.msra.mxu0 %v2025
        %2059 = vmatpush.bf16.msra.mxu0 %v2024
        %2060 = vmatpush.bf16.msra.mxu0 %v2023
        %2061 = vmatpush.bf16.msra.mxu0 %v2022
        %2062 = vmatmul.bf16.gmra.mxu0 %v1954
        %v2063 = vpop.f32.mrf.mxu0
        %v2064 = vadd.f32 0.0, %v2063
        %v2065 = vpop.f32.mrf.mxu0
        %2066 = vdwg.mxu0
        %2067 = vmatpush.bf16.msra.mxu0 %v2037
        %2068 = vmatpush.bf16.msra.mxu0 %v2036
        %2069 = vmatpush.bf16.msra.mxu0 %v2035
        %2070 = vmatpush.bf16.msra.mxu0 %v2034
        %2071 = vmatpush.bf16.msra.mxu0 %v2033
        %2072 = vmatpush.bf16.msra.mxu0 %v2032
        %2073 = vmatpush.bf16.msra.mxu0 %v2031
        %2074 = vmatpush.bf16.msra.mxu0 %v2030
        %2075 = vmatmul.bf16.gmra.mxu0 %v1955
        %v2076 = vpop.f32.mrf.mxu0
        %v2077 = vadd.f32 %v2064, %v2076
        %v2078 = vpop.f32.mrf.mxu0
        %2079 = vdwg.mxu0
        %v2080 = vpack.c.bf16 %v2077, %v2077
        %v2081 = vld [vmem:[%s6] sm:$0xf]
        %v2082 = vld [vmem:[%s6 + $0x4] sm:$0xf]
        %v2083 = vld [vmem:[%s6 + $0x8] sm:$0xf]
        %v2084 = vld [vmem:[%s6 + $0xc] sm:$0xf]
        %v2085 = vld [vmem:[%s6 + $0x10] sm:$0xf]
        %v2086 = vld [vmem:[%s6 + $0x14] sm:$0xf]
        %v2087 = vld [vmem:[%s6 + $0x18] sm:$0xf]
        %v2088 = vld [vmem:[%s6 + $0x1c] sm:$0xf]
        %v2089 = vld [vmem:[%s6 + $0x20] sm:$0xf]
        %v2090 = vld [vmem:[%s6 + $0x24] sm:$0xf]
        %v2091 = vld [vmem:[%s6 + $0x28] sm:$0xf]
        %v2092 = vld [vmem:[%s6 + $0x2c] sm:$0xf]
        %v2093 = vld [vmem:[%s6 + $0x30] sm:$0xf]
        %v2094 = vld [vmem:[%s6 + $0x34] sm:$0xf]
        %v2095 = vld [vmem:[%s6 + $0x38] sm:$0xf]
        %v2096 = vld [vmem:[%s6 + $0x3c] sm:$0xf]
        %v2097 = vld [vmem:[%s7] sm:$0x1]
        %v2099 = vperm.slane %v2097, 0
        %v2117 = vunpack.c.l.b16 %v2081
        %v2118 = vunpack.c.l.b16 %v2082
        %v2119 = vunpack.c.l.b16 %v2083
        %v2120 = vunpack.c.l.b16 %v2084
        %v2121 = vunpack.c.l.b16 %v2085
        %v2122 = vunpack.c.l.b16 %v2086
        %v2123 = vunpack.c.l.b16 %v2087
        %v2124 = vunpack.c.l.b16 %v2088
        %v2125 = vunpack.c.l.b16 %v2089
        %v2126 = vunpack.c.l.b16 %v2090
        %v2127 = vunpack.c.l.b16 %v2091
        %v2128 = vunpack.c.l.b16 %v2092
        %v2129 = vunpack.c.l.b16 %v2093
        %v2130 = vunpack.c.l.b16 %v2094
        %v2131 = vunpack.c.l.b16 %v2095
        %v2132 = vunpack.c.l.b16 %v2096
        %v2133 = vpack.c.b16 %v2118, %v2117
        %v2134 = vpack.c.b16 %v2120, %v2119
        %v2135 = vpack.c.b16 %v2122, %v2121
        %v2136 = vpack.c.b16 %v2124, %v2123
        %v2137 = vpack.c.b16 %v2126, %v2125
        %v2138 = vpack.c.b16 %v2128, %v2127
        %v2139 = vpack.c.b16 %v2130, %v2129
        %v2140 = vpack.c.b16 %v2132, %v2131
        %2149 = vmatpush.bf16.msra.mxu0 %v2140
        %2150 = vmatpush.bf16.msra.mxu0 %v2139
        %2151 = vmatpush.bf16.msra.mxu0 %v2138
        %2152 = vmatpush.bf16.msra.mxu0 %v2137
        %2153 = vmatpush.bf16.msra.mxu0 %v2136
        %2154 = vmatpush.bf16.msra.mxu0 %v2135
        %2155 = vmatpush.bf16.msra.mxu0 %v2134
        %2156 = vmatpush.bf16.msra.mxu0 %v2133
        %2157 = vmatmul.bf16.gmra.mxu0 %v2080
        %v2158 = vpop.f32.mrf.mxu0
        %v2159 = vadd.f32 %v2099, %v2158
        %v2160 = vpop.f32.mrf.mxu0
        %2161 = vdwg.mxu0
        %v2162 = vmax.f32 %v2159, 0.0
        %v2163 = vpack.c.bf16 %v2162, %v2162
        %v2164 = vld [vmem:[%s8] sm:$0xf]
        %v2165 = vld [vmem:[%s8 + $0x4] sm:$0xf]
        %v2166 = vld [vmem:[%s8 + $0x8] sm:$0xf]
        %v2167 = vld [vmem:[%s8 + $0xc] sm:$0xf]
        %v2168 = vld [vmem:[%s8 + $0x10] sm:$0xf]
        %v2169 = vld [vmem:[%s8 + $0x14] sm:$0xf]
        %v2170 = vld [vmem:[%s8 + $0x18] sm:$0xf]
        %v2171 = vld [vmem:[%s8 + $0x1c] sm:$0xf]
        %v2172 = vld [vmem:[%s8 + $0x20] sm:$0xf]
        %v2173 = vld [vmem:[%s8 + $0x24] sm:$0xf]
        %v2174 = vld [vmem:[%s8 + $0x28] sm:$0xf]
        %v2175 = vld [vmem:[%s8 + $0x2c] sm:$0xf]
        %v2176 = vld [vmem:[%s8 + $0x30] sm:$0xf]
        %v2177 = vld [vmem:[%s8 + $0x34] sm:$0xf]
        %v2178 = vld [vmem:[%s8 + $0x38] sm:$0xf]
        %v2179 = vld [vmem:[%s8 + $0x3c] sm:$0xf]
        %v2180 = vld [vmem:[%s9] sm:$0x1]
        %v2182 = vperm.slane %v2180, 0
        %v2200 = vunpack.c.l.b16 %v2164
        %v2201 = vunpack.c.l.b16 %v2165
        %v2202 = vunpack.c.l.b16 %v2166
        %v2203 = vunpack.c.l.b16 %v2167
        %v2204 = vunpack.c.l.b16 %v2168
        %v2205 = vunpack.c.l.b16 %v2169
        %v2206 = vunpack.c.l.b16 %v2170
        %v2207 = vunpack.c.l.b16 %v2171
        %v2208 = vunpack.c.l.b16 %v2172
        %v2209 = vunpack.c.l.b16 %v2173
        %v2210 = vunpack.c.l.b16 %v2174
        %v2211 = vunpack.c.l.b16 %v2175
        %v2212 = vunpack.c.l.b16 %v2176
        %v2213 = vunpack.c.l.b16 %v2177
        %v2214 = vunpack.c.l.b16 %v2178
        %v2215 = vunpack.c.l.b16 %v2179
        %v2216 = vpack.c.b16 %v2201, %v2200
        %v2217 = vpack.c.b16 %v2203, %v2202
        %v2218 = vpack.c.b16 %v2205, %v2204
        %v2219 = vpack.c.b16 %v2207, %v2206
        %v2220 = vpack.c.b16 %v2209, %v2208
        %v2221 = vpack.c.b16 %v2211, %v2210
        %v2222 = vpack.c.b16 %v2213, %v2212
        %v2223 = vpack.c.b16 %v2215, %v2214
        %2232 = vmatpush.bf16.msra.mxu0 %v2223
        %2233 = vmatpush.bf16.msra.mxu0 %v2222
        %2234 = vmatpush.bf16.msra.mxu0 %v2221
        %2235 = vmatpush.bf16.msra.mxu0 %v2220
        %2236 = vmatpush.bf16.msra.mxu0 %v2219
        %2237 = vmatpush.bf16.msra.mxu0 %v2218
        %2238 = vmatpush.bf16.msra.mxu0 %v2217
        %2239 = vmatpush.bf16.msra.mxu0 %v2216
        %2240 = vmatmul.bf16.gmra.mxu0 %v2163
        %v2241 = vpop.f32.mrf.mxu0
        %v2242 = vadd.f32 %v2182, %v2241
        %v2243 = vpop.f32.mrf.mxu0
        %2244 = vdwg.mxu0
        %2245 = vmax.xlane.f32.xlu0 %v2242
        %v2246 = vpop.xlane.xlu0 %2245
        %v2247 = vsub.f32 %v2242, %v2246
        %v2248 = vmul.f32 %v2247, 1.442695
        %v2249 = vpow.pop %v2248
        %2250 = vadd.xlane.f32.xlu0 %v2249
        %v2251 = vpop.xlane.xlu0 %2250
        %v2252 = vlog2.pop %v2251
        %v2253 = vmul.f32 %v2252, 0.6931472
        %v2254 = vsub.f32 %v2247, %v2253
        %2255 = vst [vmem:[%s10] sm:$0xff] %v2254
      $region72: #{graphsage_2_forward.1} parent=59 // pred_fallthru
        _
      // Predicated region
      $region73: #{graphsage_2_forward.1} parent=59 // pred_check
        %p2256 = pneg %p276
      $region74: #{graphsage_2_forward.1} parent=59 // pred_check_branch
        %2258 = sbr.rel (%p2256) target = $region76
      $region75: #{graphsage_2_forward.1} parent=59 // pred_region
        _
      $region76: #{graphsage_2_forward.1} parent=59 // pred_fallthru
        _
      // Predicated region
      $region77: #{graphsage_2_forward.1} parent=59 // pred_check
        %p2259 = pneg %p276
      $region78: #{graphsage_2_forward.1} parent=59 // pred_check_branch
        %2261 = sbr.rel (%p2259) target = $region80
      $region79: #{graphsage_2_forward.1} parent=59 // pred_region
        _
      $region80: #{graphsage_2_forward.1} parent=59 // pred_fallthru
        _
    $region60: #{graphsage_2_forward.1} parent=5 // pred_fallthru
      _
    %p2262 = scmp.le.s32.totalorder 2, %s16
    // Predicated region
    $region81: #{graphsage_2_forward.1} parent=5 // pred_check
      %p2263 = pneg %p2262
    $region82: #{graphsage_2_forward.1} parent=5 // pred_check_branch
      %2265 = sbr.rel (%p2263) target = $region84
    $region83: #{graphsage_2_forward.1} parent=5 // pred_region
      %s2266 = ssub.s32 %s16, 2
    $region84: #{graphsage_2_forward.1} parent=5 // pred_fallthru
      _
  $region6: #{graphsage_2_forward.1} parent=0 // loop_footer
    %s20 = sadd.s32 1, %s16
  $region7: #{graphsage_2_forward.1} parent=0 // loop_footer_branch
    %15 = sbr.rel target = $region3
  $region8: #{graphsage_2_forward.1} parent=0 // loop_exit
    _

</llo_original>
